<compile_context>
chip_gen: v5e
topology: v5e:2x2
jax: 0.10.0
libtpu: 0.0.40
codegen_flags: <defaults>
</compile_context>

<pallas_src>
import functools

import jax
import jax.numpy as jnp
from jax import lax
from jax.experimental import pallas as pl
from jax.experimental.pallas import tpu as pltpu


def _round_up(n, m):
    return ((n + m - 1) // m) * m


def _pick_row_tile(ho, wo, *, target_m=256, override=None):
    """Output rows per tile.  target_m aims TR*Wo >= 256 to fill the 256x256
    MXU on v6e/v7x (v5e's 128-wide MXU is already full at 128)."""
    # TODO(synk): handle Ho % TR remainders with a pl.when-masked last tile
    # instead of forcing TR to divide Ho (late MobileNet stages: Ho=7, 14).
    if override is not None:
        t = max(1, min(override, ho))
    else:
        t = max(1, min(ho, -(-target_m // wo)))
    while ho % t:
        t -= 1
    return t


# ----------------------------------------------------------------------------
# Fused kernel: grid = (N, Ho // TR); one output row tile per step.
# ----------------------------------------------------------------------------
def _fused_kernel(x_ref, we_ref, be_ref, wd_ref, bd_ref, wp_ref, bp_ref,
                  o_ref, hbuf, *, H, W, Cin, hidden_p, Cout_p, TR, Wo,
                  stride, hrows, has_expand, use_shortcut):
    f32 = jnp.float32
    Wp = W + 2
    t = pl.program_id(1)
    # first (spatially pre-padded) input row of this tile's halo
    p0 = pl.multiple_of(t * (TR * stride), TR * stride)

    # ---- expand 1x1 (+ folded-BN bias + ReLU6) over the (hrows, Wp) halo ----
    xin = x_ref[0, pl.ds(p0, hrows), :, :]                  # (hrows, Wp, Cin)
    xin2 = xin.reshape(hrows * Wp, Cin)
    if has_expand:
        h = jnp.dot(xin2, we_ref[...], preferred_element_type=f32)
        h = jnp.clip(h + be_ref[...], 0.0, 6.0)
    else:
        h = xin2.astype(f32)
        if hidden_p > Cin:
            h = jnp.concatenate(
                [h, jnp.zeros((hrows * Wp, hidden_p - Cin), f32)], axis=-1)
    h3 = h.reshape(hrows, Wp, hidden_p)

    # Zero the depthwise "same"-padding border of the *hidden* activation
    # (expand of a zero-padded pixel is clip(b_exp,0,6) != 0); borders only,
    # fused into the single scratch store -- no full-scratch memset.
    prow = lax.broadcasted_iota(jnp.int32, (hrows, Wp, 1), 0) + p0
    pcol = lax.broadcasted_iota(jnp.int32, (hrows, Wp, 1), 1)
    valid = (prow > 0) & (prow < H + 1) & (pcol > 0) & (pcol < Wp - 1)
    hbuf[...] = jnp.where(valid, h3, 0.0).astype(hbuf.dtype)

    # ---- depthwise 3x3 (+ folded-BN bias + ReLU6), f32 taps / accumulate ----
    wdw = wd_ref[...]                                       # (3, 3, hidden_p) f32
    if stride == 1:
        acc = None
        for kh in range(3):
            for kw in range(3):
                tap = hbuf[kh:kh + TR, kw:kw + Wo, :].astype(f32)
                term = tap * wdw[kh, kw]
                acc = term if acc is None else acc + term
    else:
        # stride == 2: accumulate dense in columns, subsample even columns at
        # the end; row subsampling is a free leading-dim reshape.
        # TODO(synk): deinterleave column parity at hbuf-build time to drop
        # the ~2x dense column work if stride-2 blocks become hot.
        dense = None
        for kh in range(3):
            nr = 2 * TR if kh < 2 else 2 * TR - 1
            for kw in range(3):
                blk = hbuf[kh:kh + nr, kw:kw + W, :].astype(f32)
                if nr < 2 * TR:
                    blk = jnp.concatenate(
                        [blk, jnp.zeros((2 * TR - nr, W, hidden_p), f32)],
                        axis=0)
                term = blk.reshape(TR, 2, W, hidden_p)[:, 0] * wdw[kh, kw]
                dense = term if dense is None else dense + term
        if W < 2 * Wo:                                      # odd W
            dense = jnp.concatenate(
                [dense, jnp.zeros((TR, 2 * Wo - W, hidden_p), f32)], axis=1)
        acc = dense.reshape(TR, Wo, 2, hidden_p)[:, :, 0, :]

    y = jnp.clip(acc + bd_ref[...], 0.0, 6.0)               # (TR, Wo, hidden_p)

    # ---- project 1x1 + folded-BN bias (+ residual) --------------------------
    out = jnp.dot(y.reshape(TR * Wo, hidden_p).astype(wp_ref.dtype),
                  wp_ref[...], preferred_element_type=f32)
    out = out + bp_ref[...]

    if use_shortcut:                                        # stride==1, Cin==Cout
        res = x_ref[0, pl.ds(p0 + 1, TR), :, :].astype(f32)[:, 1:W + 1, :]
        res = res.reshape(TR * Wo, Cin)
        if Cout_p > Cin:
            res = jnp.concatenate(
                [res, jnp.zeros((TR * Wo, Cout_p - Cin), f32)], axis=-1)
        out = out + res

    o_ref[...] = out.reshape(1, TR, Wo, Cout_p).astype(o_ref.dtype)


# ----------------------------------------------------------------------------
# Wrapper
# ----------------------------------------------------------------------------
def inverted_residual(x, params, *, stride, expand_ratio,
                      compute_dtype=jnp.float32, row_tile_target=None):
    """Fused InvertedResidual forward (inference, BN folded).  x: NHWC."""
    N, H, W, Cin = x.shape
    hidden, Cout = params["w_proj"].shape
    has_expand = expand_ratio != 1
    use_shortcut = (stride == 1) and (Cin == Cout)
    Ho = (H + 2 - 3) // stride + 1                          # 3x3, pad=1
    Wo = (W + 2 - 3) // stride + 1

    hidden_p = _round_up(hidden, 128)                       # lane-dense matmuls
    Cout_p = _round_up(Cout, 128)                           # lane-dense stores

    f32 = jnp.float32
    cdt = jnp.dtype(compute_dtype)

    # ---- fold BN scales into the conv weights (one-time, host side) --------
    def pad_cols(a, cols):
        return jnp.pad(a, ((0, 0), (0, cols - a.shape[1])))

    def pad_vec(a, cols):
        return jnp.pad(a, (0, cols - a.shape[0])).reshape(1, cols)

    if has_expand:
        w_exp = params["w_exp"].astype(f32) * params["s_exp"].astype(f32)[None, :]
        w_exp_p = pad_cols(w_exp, hidden_p).astype(cdt)          # (Cin, hidden_p)
        b_exp_p = pad_vec(params["b_exp"].astype(f32), hidden_p)  # f32 bias
    else:
        w_exp_p = jnp.zeros((Cin, hidden_p), cdt)                 # unused
        b_exp_p = jnp.zeros((1, hidden_p), f32)

    w_dw = params["w_dw"].astype(f32) * params["s_dw"].astype(f32)[None, None, :]
    w_dw_p = jnp.pad(w_dw, ((0, 0), (0, 0), (0, hidden_p - hidden)))  # f32 taps
    b_dw_p = pad_vec(params["b_dw"].astype(f32), hidden_p)

    w_proj = params["w_proj"].astype(f32) * params["s_proj"].astype(f32)[None, :]
    w_proj_p = jnp.pad(
        w_proj, ((0, hidden_p - hidden), (0, Cout_p - Cout))).astype(cdt)
    b_proj_p = pad_vec(params["b_proj"].astype(f32), Cout_p)

    # spatially pre-padded input (Cin channels only: the cheapest tensor here)
    x_p = jnp.pad(x.astype(cdt), ((0, 0), (1, 1), (1, 1), (0, 0)))

    TR = _pick_row_tile(Ho, Wo, override=row_tile_target)
    hrows = (TR - 1) * stride + 3                           # halo rows per tile
    grid = (N, Ho // TR)

    kernel = functools.partial(
        _fused_kernel, H=H, W=W, Cin=Cin, hidden_p=hidden_p, Cout_p=Cout_p,
        TR=TR, Wo=Wo, stride=stride, hrows=hrows,
        has_expand=has_expand, use_shortcut=use_shortcut)

    # explicit scoped-VMEM limit from the actual working set (with headroom)
    itc = cdt.itemsize
    in_blk = (H + 2) * (W + 2) * Cin * itc
    out_blk = TR * Wo * Cout_p * itc
    hbuf_b = hrows * (W + 2) * hidden_p * itc
    wts = ((w_exp_p.size + w_proj_p.size) * itc
           + (w_dw_p.size + b_exp_p.size + b_dw_p.size + b_proj_p.size) * 4)
    tmps = (hrows * (W + 2) * hidden_p + 2 * TR * Wo * hidden_p
            + 2 * TR * Wo * Cout_p) * 4
    est = hbuf_b + 2 * (in_blk + out_blk + wts) + tmps
    vmem_limit = min(max(int(1.5 * est) + (8 << 20), 32 << 20), 128 << 20)

    flops = (2 * N * H * W * Cin * hidden           # expand
             + 2 * 9 * N * Ho * Wo * hidden         # depthwise
             + 2 * N * Ho * Wo * hidden * Cout)     # project
    bytes_accessed = int(itc * (x_p.size + N * Ho * Wo * Cout_p
                                + w_exp_p.size + w_proj_p.size)
                         + 4 * w_dw_p.size)

    # TODO(synk): mark the weight/bias specs pipeline_mode=pl.Buffered(1)
    # (single-buffered) once confirmed supported, to save VMEM on v7x.
    out_p = pl.pallas_call(
        kernel,
        out_shape=jax.ShapeDtypeStruct((N, Ho, Wo, Cout_p), cdt),
        grid=grid,
        in_specs=[
            pl.BlockSpec((1, H + 2, W + 2, Cin), lambda n, t: (n, 0, 0, 0)),
            pl.BlockSpec((Cin, hidden_p), lambda n, t: (0, 0)),
            pl.BlockSpec((1, hidden_p), lambda n, t: (0, 0)),
            pl.BlockSpec((3, 3, hidden_p), lambda n, t: (0, 0, 0)),
            pl.BlockSpec((1, hidden_p), lambda n, t: (0, 0)),
            pl.BlockSpec((hidden_p, Cout_p), lambda n, t: (0, 0)),
            pl.BlockSpec((1, Cout_p), lambda n, t: (0, 0)),
        ],
        out_specs=pl.BlockSpec((1, TR, Wo, Cout_p), lambda n, t: (n, t, 0, 0)),
        scratch_shapes=[pltpu.VMEM((hrows, W + 2, hidden_p), cdt)],
        compiler_params=pltpu.CompilerParams(
            dimension_semantics=("parallel", "parallel"),
            vmem_limit_bytes=vmem_limit),
        cost_estimate=pl.CostEstimate(flops=flops, transcendentals=0,
                                      bytes_accessed=bytes_accessed),
    )(x_p, w_exp_p, b_exp_p, w_dw_p, b_dw_p, w_proj_p, b_proj_p)

    # TODO(synk): when chaining MobileNet blocks, keep the Cout_p-padded
    # layout and drop this slice (saves a full-output HBM read + write).
    return out_p[..., :Cout] if Cout_p != Cout else out_p


# ----------------------------------------------------------------------------
# Pure-JAX reference (validation only) + helpers
# ----------------------------------------------------------------------------
def fold_bn(gamma, beta, mean, var, eps=1e-5):
    scale = gamma / jnp.sqrt(var + eps)
    bias = beta - mean * scale
    return scale, bias


def ref_inverted_residual(x, p, *, stride, expand_ratio, eps=1e-5):
    def bn(y, g, b, m, v):
        return (y - m) / jnp.sqrt(v + eps) * g + b

    def relu6(y):
        return jnp.clip(y, 0.0, 6.0)

    Cin = x.shape[-1]
    Cout = p["w_proj"].shape[1]
    h = x
    if expand_ratio != 1:
        h = lax.conv_general_dilated(h, p["w_exp"][None, None], (1, 1), "VALID",
                                     dimension_numbers=("NHWC", "HWIO", "NHWC"))
        h = relu6(bn(h, p["g1"], p["be1"], p["m1"], p["v1"]))
    C = h.shape[-1]
    h = lax.conv_general_dilated(h, p["w_dw"][:, :, None, :], (stride, stride),
                                 [(1, 1), (1, 1)],
                                 dimension_numbers=("NHWC", "HWIO", "NHWC"),
                                 feature_group_count=C)
    h = relu6(bn(h, p["g2"], p["be2"], p["m2"], p["v2"]))
    h = lax.conv_general_dilated(h, p["w_proj"][None, None], (1, 1), "VALID",
                                 dimension_numbers=("NHWC", "HWIO", "NHWC"))
    h = bn(h, p["g3"], p["be3"], p["m3"], p["v3"])
    if stride == 1 and Cin == Cout:
        h = x + h
    return h


def _make_params(key, Cin, Cout, expand):
    hidden = Cin * expand
    ks = jax.random.split(key, 16)
    f32 = jnp.float32
    p = {}
    if expand != 1:
        p["w_exp"] = 0.1 * jax.random.normal(ks[0], (Cin, hidden), f32)
        p["g1"] = 1.0 + 0.1 * jax.random.normal(ks[1], (hidden,), f32)
        p["be1"] = 0.1 * jax.random.normal(ks[2], (hidden,), f32)
        p["m1"] = 0.1 * jax.random.normal(ks[3], (hidden,), f32)
        p["v1"] = jnp.abs(jax.random.normal(ks[4], (hidden,), f32)) + 0.5
        p["s_exp"], p["b_exp"] = fold_bn(p["g1"], p["be1"], p["m1"], p["v1"])
    p["w_dw"] = 0.1 * jax.random.normal(ks[5], (3, 3, hidden), f32)
    p["g2"] = 1.0 + 0.1 * jax.random.normal(ks[6], (hidden,), f32)
    p["be2"] = 0.1 * jax.random.normal(ks[7], (hidden,), f32)
    p["m2"] = 0.1 * jax.random.normal(ks[8], (hidden,), f32)
    p["v2"] = jnp.abs(jax.random.normal(ks[9], (hidden,), f32)) + 0.5
    p["s_dw"], p["b_dw"] = fold_bn(p["g2"], p["be2"], p["m2"], p["v2"])
    p["w_proj"] = 0.1 * jax.random.normal(ks[10], (hidden, Cout), f32)
    p["g3"] = 1.0 + 0.1 * jax.random.normal(ks[11], (Cout,), f32)
    p["be3"] = 0.1 * jax.random.normal(ks[12], (Cout,), f32)
    p["m3"] = 0.1 * jax.random.normal(ks[13], (Cout,), f32)
    p["v3"] = jnp.abs(jax.random.normal(ks[14], (Cout,), f32)) + 0.5
    p["s_proj"], p["b_proj"] = fold_bn(p["g3"], p["be3"], p["m3"], p["v3"])
    return p


def _run_case(name, key, *, N, Cin, Cout, H, W, stride, expand,
              compute_dtype=jnp.float32, row_tile_target=None,
              atol=1e-3, rtol=1e-3):
    kx, kp = jax.random.split(key)
    x_nchw = jax.random.normal(kx, (N, Cin, H, W), jnp.float32)  # torch layout
    x = jnp.transpose(x_nchw, (0, 2, 3, 1))                      # NHWC
    p = _make_params(kp, Cin, Cout, expand)

    fn = jax.jit(functools.partial(
        inverted_residual, stride=stride, expand_ratio=expand,
        compute_dtype=compute_dtype, row_tile_target=row_tile_target))
    out = fn(x, p)
    jax.block_until_ready(out)

    x_ref_in = x
    if jnp.dtype(compute_dtype) != jnp.float32:
        # reference on the storage-rounded input (residual path uses bf16 x)
        x_ref_in = x.astype(compute_dtype).astype(jnp.float32)
    ref = ref_inverted_residual(x_ref_in, p, stride=stride, expand_ratio=expand)

    out_f = out.astype(jnp.float32)
    assert out_f.shape == ref.shape, (name, out_f.shape, ref.shape)
    err = float(jnp.max(jnp.abs(out_f - ref)))
    assert jnp.allclose(out_f, ref, atol=atol, rtol=rtol), (name, err)
    return err


# ----------------------------------------------------------------------------
if __name__ == "__main__":
    root = jax.random.PRNGKey(0)
    k = jax.random.split(root, 4)

    # stride=1, expand=2, shortcut; 4 row tiles -> exercises top / interior /
    # bottom halo tiles and the residual path.
    _run_case("s1_e2_shortcut", k[0], N=2, Cin=8, Cout=8, H=16, W=16,
              stride=1, expand=2, row_tile_target=4)
    # stride=2, expand=2, no shortcut -> exercises the strided depthwise path.
    _run_case("s2_e2", k[1], N=2, Cin=8, Cout=16, H=16, W=16,
              stride=2, expand=2)
    # expand_ratio=1 (no expand conv), shortcut.
    _run_case("s1_e1_shortcut", k[2], N=1, Cin=8, Cout=8, H=16, W=16,
              stride=1, expand=1)
    # bf16 storage / f32 accumulation (v6e/v7x bandwidth + VMEM lever);
    # tolerance loosened for bf16 rounding of x, weights and the output store.
    _run_case("s1_e2_bf16", k[3], N=2, Cin=8, Cout=8, H=16, W=16,
              stride=1, expand=2, compute_dtype=jnp.bfloat16,
              row_tile_target=8, atol=8e-2, rtol=8e-2)

    print("KERNEL_OK")
</pallas_src>

<mosaic_0001>
module attributes {stable_mosaic.version = 11 : i64} {
  func.func @_fused_kernel(%arg0: i32, %arg1: i32, %arg2: memref<1x18x18x8xf32, #tpu.memory_space<vmem>>, %arg3: memref<8x128xf32, #tpu.memory_space<vmem>>, %arg4: memref<1x128xf32, #tpu.memory_space<vmem>>, %arg5: memref<3x3x128xf32, #tpu.memory_space<vmem>>, %arg6: memref<1x128xf32, #tpu.memory_space<vmem>>, %arg7: memref<128x128xf32, #tpu.memory_space<vmem>>, %arg8: memref<1x128xf32, #tpu.memory_space<vmem>>, %arg9: memref<1x4x16x128xf32, #tpu.memory_space<vmem>>, %arg10: memref<6x18x128xf32, #tpu.memory_space<vmem>>) attributes {dimension_semantics = [#tpu.dimension_semantics<parallel>, #tpu.dimension_semantics<parallel>], iteration_bounds = array<i64: 2, 4>, scalar_prefetch = 0 : i64, scratch_operands = 1 : i64, tpu.core_type = #tpu.core_type<tc>, window_params = [{transform_indices = @transform_0, window_bounds = array<i64: 1, 18, 18, 8>}, {pipeline_mode = #tpu.pipeline_mode<synchronous>, transform_indices = @transform_1, window_bounds = array<i64: 8, 128>}, {pipeline_mode = #tpu.pipeline_mode<synchronous>, transform_indices = @transform_2, window_bounds = array<i64: 1, 128>}, {pipeline_mode = #tpu.pipeline_mode<synchronous>, transform_indices = @transform_3, window_bounds = array<i64: 3, 3, 128>}, {pipeline_mode = #tpu.pipeline_mode<synchronous>, transform_indices = @transform_4, window_bounds = array<i64: 1, 128>}, {pipeline_mode = #tpu.pipeline_mode<synchronous>, transform_indices = @transform_5, window_bounds = array<i64: 128, 128>}, {pipeline_mode = #tpu.pipeline_mode<synchronous>, transform_indices = @transform_6, window_bounds = array<i64: 1, 128>}, {transform_indices = @transform_7, window_bounds = array<i64: 1, 4, 16, 128>}]} {
    %c4_i32 = arith.constant 4 : i32
    %0 = arith.muli %arg1, %c4_i32 : i32
    %1 = tpu.assume_multiple %0, 4 : i32
    %c0 = arith.constant 0 : index
    %2 = arith.index_cast %1 : i32 to index
    %c0_0 = arith.constant 0 : index
    %c0_1 = arith.constant 0 : index
    %3 = vector.load %arg2[%c0, %2, %c0_0, %c0_1] : memref<1x18x18x8xf32, #tpu.memory_space<vmem>>, vector<1x6x18x8xf32>
    %4 = vector.shape_cast %3 : vector<1x6x18x8xf32> to vector<6x18x8xf32>
    %5 = vector.shape_cast %4 : vector<6x18x8xf32> to vector<108x8xf32>
    %c0_2 = arith.constant 0 : index
    %c0_3 = arith.constant 0 : index
    %6 = vector.load %arg3[%c0_2, %c0_3] : memref<8x128xf32, #tpu.memory_space<vmem>>, vector<8x128xf32>
    %cst = arith.constant dense<0.000000e+00> : vector<108x128xf32>
    %7 = tpu.matmul %5, %6, %cst {dimension_numbers = #tpu.dot_dimension_numbers<[1], [0], [0], [1], [0, 0, 1, 1], [], []>} : vector<108x8xf32>, vector<8x128xf32>, vector<108x128xf32> -> vector<108x128xf32>
    %c0_4 = arith.constant 0 : index
    %c0_5 = arith.constant 0 : index
    %8 = vector.load %arg4[%c0_4, %c0_5] : memref<1x128xf32, #tpu.memory_space<vmem>>, vector<1x128xf32>
    %9 = vector.broadcast %8 : vector<1x128xf32> to vector<108x128xf32>
    %10 = arith.addf %7, %9 : vector<108x128xf32>
    %cst_6 = arith.constant 0.000000e+00 : f32
    %cst_7 = arith.constant 6.000000e+00 : f32
    %11 = vector.broadcast %cst_6 : f32 to vector<108x128xf32>
    %12 = arith.maximumf %11, %10 : vector<108x128xf32>
    %13 = vector.broadcast %cst_7 : f32 to vector<108x128xf32>
    %14 = arith.minimumf %13, %12 : vector<108x128xf32>
    %15 = vector.shape_cast %14 : vector<108x128xf32> to vector<6x18x128xf32>
    %16 = tpu.iota {dimensions = array<i32: 0>} : vector<6x18x1xi32>
    %17 = vector.broadcast %1 : i32 to vector<6x18x1xi32>
    %18 = arith.addi %16, %17 : vector<6x18x1xi32>
    %19 = tpu.iota {dimensions = array<i32: 1>} : vector<6x18x1xi32>
    %c0_i32 = arith.constant 0 : i32
    %20 = vector.broadcast %c0_i32 : i32 to vector<6x18x1xi32>
    %21 = arith.cmpi sgt, %18, %20 : vector<6x18x1xi32>
    %c17_i32 = arith.constant 17 : i32
    %22 = vector.broadcast %c17_i32 : i32 to vector<6x18x1xi32>
    %23 = arith.cmpi slt, %18, %22 : vector<6x18x1xi32>
    %24 = arith.andi %21, %23 : vector<6x18x1xi1>
    %c0_i32_8 = arith.constant 0 : i32
    %25 = vector.broadcast %c0_i32_8 : i32 to vector<6x18x1xi32>
    %26 = arith.cmpi sgt, %19, %25 : vector<6x18x1xi32>
    %27 = arith.andi %24, %26 : vector<6x18x1xi1>
    %c17_i32_9 = arith.constant 17 : i32
    %28 = vector.broadcast %c17_i32_9 : i32 to vector<6x18x1xi32>
    %29 = arith.cmpi slt, %19, %28 : vector<6x18x1xi32>
    %30 = arith.andi %27, %29 : vector<6x18x1xi1>
    %cst_10 = arith.constant 0.000000e+00 : f32
    %31 = vector.shape_cast %30 : vector<6x18x1xi1> to vector<6x18x1xi1>
    %32 = vector.broadcast %31 : vector<6x18x1xi1> to vector<6x18x128xi1>
    %33 = vector.broadcast %cst_10 : f32 to vector<6x18x128xf32>
    %34 = arith.select %32, %15, %33 : vector<6x18x128xi1>, vector<6x18x128xf32>
    %c0_11 = arith.constant 0 : index
    %c0_12 = arith.constant 0 : index
    %c0_13 = arith.constant 0 : index
    %35 = vector.load %arg10[%c0_11, %c0_12, %c0_13] : memref<6x18x128xf32, #tpu.memory_space<vmem>>, vector<6x18x128xf32>
    tpu.vector_store %arg10[%c0_11, %c0_12, %c0_13], %34 {strides = array<i32>} : memref<6x18x128xf32, #tpu.memory_space<vmem>>, vector<6x18x128xf32>,
    %c0_14 = arith.constant 0 : index
    %c0_15 = arith.constant 0 : index
    %c0_16 = arith.constant 0 : index
    %36 = vector.load %arg5[%c0_14, %c0_15, %c0_16] : memref<3x3x128xf32, #tpu.memory_space<vmem>>, vector<3x3x128xf32>
    %c0_17 = arith.constant 0 : index
    %c0_18 = arith.constant 0 : index
    %c0_19 = arith.constant 0 : index
    %37 = vector.load %arg10[%c0_17, %c0_18, %c0_19] : memref<6x18x128xf32, #tpu.memory_space<vmem>>, vector<4x16x128xf32>
    %38 = vector.extract_strided_slice %36 {offsets = [0, 0, 0], sizes = [1, 1, 128], strides = [1, 1, 1]} : vector<3x3x128xf32> to vector<1x1x128xf32>
    %39 = vector.shape_cast %38 : vector<1x1x128xf32> to vector<128xf32>
    %40 = vector.shape_cast %39 : vector<128xf32> to vector<1x1x128xf32>
    %41 = vector.broadcast %40 : vector<1x1x128xf32> to vector<4x16x128xf32>
    %42 = arith.mulf %37, %41 : vector<4x16x128xf32>
    %c0_20 = arith.constant 0 : index
    %c1 = arith.constant 1 : index
    %c0_21 = arith.constant 0 : index
    %43 = vector.load %arg10[%c0_20, %c1, %c0_21] : memref<6x18x128xf32, #tpu.memory_space<vmem>>, vector<4x16x128xf32>
    %44 = vector.extract_strided_slice %36 {offsets = [0, 1, 0], sizes = [1, 1, 128], strides = [1, 1, 1]} : vector<3x3x128xf32> to vector<1x1x128xf32>
    %45 = vector.shape_cast %44 : vector<1x1x128xf32> to vector<128xf32>
    %46 = vector.shape_cast %45 : vector<128xf32> to vector<1x1x128xf32>
    %47 = vector.broadcast %46 : vector<1x1x128xf32> to vector<4x16x128xf32>
    %48 = arith.mulf %43, %47 : vector<4x16x128xf32>
    %49 = arith.addf %42, %48 : vector<4x16x128xf32>
    %c0_22 = arith.constant 0 : index
    %c2 = arith.constant 2 : index
    %c0_23 = arith.constant 0 : index
    %50 = vector.load %arg10[%c0_22, %c2, %c0_23] : memref<6x18x128xf32, #tpu.memory_space<vmem>>, vector<4x16x128xf32>
    %51 = vector.extract_strided_slice %36 {offsets = [0, 2, 0], sizes = [1, 1, 128], strides = [1, 1, 1]} : vector<3x3x128xf32> to vector<1x1x128xf32>
    %52 = vector.shape_cast %51 : vector<1x1x128xf32> to vector<128xf32>
    %53 = vector.shape_cast %52 : vector<128xf32> to vector<1x1x128xf32>
    %54 = vector.broadcast %53 : vector<1x1x128xf32> to vector<4x16x128xf32>
    %55 = arith.mulf %50, %54 : vector<4x16x128xf32>
    %56 = arith.addf %49, %55 : vector<4x16x128xf32>
    %c1_24 = arith.constant 1 : index
    %c0_25 = arith.constant 0 : index
    %c0_26 = arith.constant 0 : index
    %57 = vector.load %arg10[%c1_24, %c0_25, %c0_26] : memref<6x18x128xf32, #tpu.memory_space<vmem>>, vector<4x16x128xf32>
    %58 = vector.extract_strided_slice %36 {offsets = [1, 0, 0], sizes = [1, 1, 128], strides = [1, 1, 1]} : vector<3x3x128xf32> to vector<1x1x128xf32>
    %59 = vector.shape_cast %58 : vector<1x1x128xf32> to vector<128xf32>
    %60 = vector.shape_cast %59 : vector<128xf32> to vector<1x1x128xf32>
    %61 = vector.broadcast %60 : vector<1x1x128xf32> to vector<4x16x128xf32>
    %62 = arith.mulf %57, %61 : vector<4x16x128xf32>
    %63 = arith.addf %56, %62 : vector<4x16x128xf32>
    %c1_27 = arith.constant 1 : index
    %c1_28 = arith.constant 1 : index
    %c0_29 = arith.constant 0 : index
    %64 = vector.load %arg10[%c1_27, %c1_28, %c0_29] : memref<6x18x128xf32, #tpu.memory_space<vmem>>, vector<4x16x128xf32>
    %65 = vector.extract_strided_slice %36 {offsets = [1, 1, 0], sizes = [1, 1, 128], strides = [1, 1, 1]} : vector<3x3x128xf32> to vector<1x1x128xf32>
    %66 = vector.shape_cast %65 : vector<1x1x128xf32> to vector<128xf32>
    %67 = vector.shape_cast %66 : vector<128xf32> to vector<1x1x128xf32>
    %68 = vector.broadcast %67 : vector<1x1x128xf32> to vector<4x16x128xf32>
    %69 = arith.mulf %64, %68 : vector<4x16x128xf32>
    %70 = arith.addf %63, %69 : vector<4x16x128xf32>
    %c1_30 = arith.constant 1 : index
    %c2_31 = arith.constant 2 : index
    %c0_32 = arith.constant 0 : index
    %71 = vector.load %arg10[%c1_30, %c2_31, %c0_32] : memref<6x18x128xf32, #tpu.memory_space<vmem>>, vector<4x16x128xf32>
    %72 = vector.extract_strided_slice %36 {offsets = [1, 2, 0], sizes = [1, 1, 128], strides = [1, 1, 1]} : vector<3x3x128xf32> to vector<1x1x128xf32>
    %73 = vector.shape_cast %72 : vector<1x1x128xf32> to vector<128xf32>
    %74 = vector.shape_cast %73 : vector<128xf32> to vector<1x1x128xf32>
    %75 = vector.broadcast %74 : vector<1x1x128xf32> to vector<4x16x128xf32>
    %76 = arith.mulf %71, %75 : vector<4x16x128xf32>
    %77 = arith.addf %70, %76 : vector<4x16x128xf32>
    %c2_33 = arith.constant 2 : index
    %c0_34 = arith.constant 0 : index
    %c0_35 = arith.constant 0 : index
    %78 = vector.load %arg10[%c2_33, %c0_34, %c0_35] : memref<6x18x128xf32, #tpu.memory_space<vmem>>, vector<4x16x128xf32>
    %79 = vector.extract_strided_slice %36 {offsets = [2, 0, 0], sizes = [1, 1, 128], strides = [1, 1, 1]} : vector<3x3x128xf32> to vector<1x1x128xf32>
    %80 = vector.shape_cast %79 : vector<1x1x128xf32> to vector<128xf32>
    %81 = vector.shape_cast %80 : vector<128xf32> to vector<1x1x128xf32>
    %82 = vector.broadcast %81 : vector<1x1x128xf32> to vector<4x16x128xf32>
    %83 = arith.mulf %78, %82 : vector<4x16x128xf32>
    %84 = arith.addf %77, %83 : vector<4x16x128xf32>
    %c2_36 = arith.constant 2 : index
    %c1_37 = arith.constant 1 : index
    %c0_38 = arith.constant 0 : index
    %85 = vector.load %arg10[%c2_36, %c1_37, %c0_38] : memref<6x18x128xf32, #tpu.memory_space<vmem>>, vector<4x16x128xf32>
    %86 = vector.extract_strided_slice %36 {offsets = [2, 1, 0], sizes = [1, 1, 128], strides = [1, 1, 1]} : vector<3x3x128xf32> to vector<1x1x128xf32>
    %87 = vector.shape_cast %86 : vector<1x1x128xf32> to vector<128xf32>
    %88 = vector.shape_cast %87 : vector<128xf32> to vector<1x1x128xf32>
    %89 = vector.broadcast %88 : vector<1x1x128xf32> to vector<4x16x128xf32>
    %90 = arith.mulf %85, %89 : vector<4x16x128xf32>
    %91 = arith.addf %84, %90 : vector<4x16x128xf32>
    %c2_39 = arith.constant 2 : index
    %c2_40 = arith.constant 2 : index
    %c0_41 = arith.constant 0 : index
    %92 = vector.load %arg10[%c2_39, %c2_40, %c0_41] : memref<6x18x128xf32, #tpu.memory_space<vmem>>, vector<4x16x128xf32>
    %93 = vector.extract_strided_slice %36 {offsets = [2, 2, 0], sizes = [1, 1, 128], strides = [1, 1, 1]} : vector<3x3x128xf32> to vector<1x1x128xf32>
    %94 = vector.shape_cast %93 : vector<1x1x128xf32> to vector<128xf32>
    %95 = vector.shape_cast %94 : vector<128xf32> to vector<1x1x128xf32>
    %96 = vector.broadcast %95 : vector<1x1x128xf32> to vector<4x16x128xf32>
    %97 = arith.mulf %92, %96 : vector<4x16x128xf32>
    %98 = arith.addf %91, %97 : vector<4x16x128xf32>
    %c0_42 = arith.constant 0 : index
    %c0_43 = arith.constant 0 : index
    %99 = vector.load %arg6[%c0_42, %c0_43] : memref<1x128xf32, #tpu.memory_space<vmem>>, vector<1x128xf32>
    %100 = vector.shape_cast %99 : vector<1x128xf32> to vector<1x1x128xf32>
    %101 = vector.broadcast %100 : vector<1x1x128xf32> to vector<4x16x128xf32>
    %102 = arith.addf %98, %101 : vector<4x16x128xf32>
    %cst_44 = arith.constant 0.000000e+00 : f32
    %cst_45 = arith.constant 6.000000e+00 : f32
    %103 = vector.broadcast %cst_44 : f32 to vector<4x16x128xf32>
    %104 = arith.maximumf %103, %102 : vector<4x16x128xf32>
    %105 = vector.broadcast %cst_45 : f32 to vector<4x16x128xf32>
    %106 = arith.minimumf %105, %104 : vector<4x16x128xf32>
    %107 = vector.shape_cast %106 : vector<4x16x128xf32> to vector<64x128xf32>
    %c0_46 = arith.constant 0 : index
    %c0_47 = arith.constant 0 : index
    %108 = vector.load %arg7[%c0_46, %c0_47] : memref<128x128xf32, #tpu.memory_space<vmem>>, vector<128x128xf32>
    %cst_48 = arith.constant dense<0.000000e+00> : vector<64x128xf32>
    %109 = tpu.matmul %107, %108, %cst_48 {dimension_numbers = #tpu.dot_dimension_numbers<[1], [0], [0], [1], [0, 0, 1, 1], [], []>} : vector<64x128xf32>, vector<128x128xf32>, vector<64x128xf32> -> vector<64x128xf32>
    %c0_49 = arith.constant 0 : index
    %c0_50 = arith.constant 0 : index
    %110 = vector.load %arg8[%c0_49, %c0_50] : memref<1x128xf32, #tpu.memory_space<vmem>>, vector<1x128xf32>
    %111 = vector.broadcast %110 : vector<1x128xf32> to vector<64x128xf32>
    %112 = arith.addf %109, %111 : vector<64x128xf32>
    %c1_i32 = arith.constant 1 : i32
    %113 = arith.addi %1, %c1_i32 : i32
    %c0_51 = arith.constant 0 : index
    %114 = arith.index_cast %113 : i32 to index
    %c0_52 = arith.constant 0 : index
    %c0_53 = arith.constant 0 : index
    %115 = vector.load %arg2[%c0_51, %114, %c0_52, %c0_53] : memref<1x18x18x8xf32, #tpu.memory_space<vmem>>, vector<1x4x18x8xf32>
    %116 = vector.shape_cast %115 : vector<1x4x18x8xf32> to vector<4x18x8xf32>
    %117 = vector.extract_strided_slice %116 {offsets = [0, 1, 0], sizes = [4, 16, 8], strides = [1, 1, 1]} : vector<4x18x8xf32> to vector<4x16x8xf32>
    %118 = vector.shape_cast %117 : vector<4x16x8xf32> to vector<64x8xf32>
    %cst_54 = arith.constant 0.000000e+00 : f32
    %119 = vector.broadcast %cst_54 : f32 to vector<64x120xf32>
    %120 = tpu.concatenate %118, %119 in 1 : vector<64x8xf32>, vector<64x120xf32> -> vector<64x128xf32>
    %121 = arith.addf %112, %120 : vector<64x128xf32>
    %122 = vector.shape_cast %121 : vector<64x128xf32> to vector<1x4x16x128xf32>
    %c0_55 = arith.constant 0 : index
    %c0_56 = arith.constant 0 : index
    %c0_57 = arith.constant 0 : index
    %c0_58 = arith.constant 0 : index
    %123 = vector.load %arg9[%c0_55, %c0_56, %c0_57, %c0_58] : memref<1x4x16x128xf32, #tpu.memory_space<vmem>>, vector<1x4x16x128xf32>
    tpu.vector_store %arg9[%c0_55, %c0_56, %c0_57, %c0_58], %122 {strides = array<i32>} : memref<1x4x16x128xf32, #tpu.memory_space<vmem>>, vector<1x4x16x128xf32>,
    return
  }
  func.func @transform_0(%arg0: i32, %arg1: i32) -> (i32, i32, i32, i32) {
    %c0_i32 = arith.constant 0 : i32
    %c0_i32_0 = arith.constant 0 : i32
    %c0_i32_1 = arith.constant 0 : i32
    %c0_i32_2 = arith.constant 0 : i32
    return %arg0, %c0_i32, %c0_i32_0, %c0_i32_1 : i32, i32, i32, i32
  }
  func.func @transform_1(%arg0: i32, %arg1: i32) -> (i32, i32) {
    %c0_i32 = arith.constant 0 : i32
    %c0_i32_0 = arith.constant 0 : i32
    %c0_i32_1 = arith.constant 0 : i32
    return %c0_i32, %c0_i32_0 : i32, i32
  }
  func.func @transform_2(%arg0: i32, %arg1: i32) -> (i32, i32) {
    %c0_i32 = arith.constant 0 : i32
    %c0_i32_0 = arith.constant 0 : i32
    %c0_i32_1 = arith.constant 0 : i32
    return %c0_i32, %c0_i32_0 : i32, i32
  }
  func.func @transform_3(%arg0: i32, %arg1: i32) -> (i32, i32, i32) {
    %c0_i32 = arith.constant 0 : i32
    %c0_i32_0 = arith.constant 0 : i32
    %c0_i32_1 = arith.constant 0 : i32
    %c0_i32_2 = arith.constant 0 : i32
    return %c0_i32, %c0_i32_0, %c0_i32_1 : i32, i32, i32
  }
  func.func @transform_4(%arg0: i32, %arg1: i32) -> (i32, i32) {
    %c0_i32 = arith.constant 0 : i32
    %c0_i32_0 = arith.constant 0 : i32
    %c0_i32_1 = arith.constant 0 : i32
    return %c0_i32, %c0_i32_0 : i32, i32
  }
  func.func @transform_5(%arg0: i32, %arg1: i32) -> (i32, i32) {
    %c0_i32 = arith.constant 0 : i32
    %c0_i32_0 = arith.constant 0 : i32
    %c0_i32_1 = arith.constant 0 : i32
    return %c0_i32, %c0_i32_0 : i32, i32
  }
  func.func @transform_6(%arg0: i32, %arg1: i32) -> (i32, i32) {
    %c0_i32 = arith.constant 0 : i32
    %c0_i32_0 = arith.constant 0 : i32
    %c0_i32_1 = arith.constant 0 : i32
    return %c0_i32, %c0_i32_0 : i32, i32
  }
  func.func @transform_7(%arg0: i32, %arg1: i32) -> (i32, i32, i32, i32) {
    %c0_i32 = arith.constant 0 : i32
    %c0_i32_0 = arith.constant 0 : i32
    %c0_i32_1 = arith.constant 0 : i32
    return %arg0, %arg1, %c0_i32, %c0_i32_0 : i32, i32, i32, i32
  }
}

</mosaic_0001>

<llo_original>
// kernel: inverted_residual.1
$region0: #{inverted_residual.1}
  #allocation0 [shape = 'u32[]', space=smem, size = 0x4, offset = 0x4, fixed_abs, tag = 'smem constant byte address 0x4 - core index']
  #allocation1 [shape = 'u32[72,128]{1,0:T(1,128)}', space=vmem, size = 0x9000, scoped, tag = 'internal scratch']
  #allocation2 [shape = 'f32[6,18,128]{2,1,0:T(8,128)}', space=vmem, size = 0x12000, scoped, tag = 'scratch operand']
  %s0 = inlined_call_operand.vmem [shape: f32[2,18,18,8], index: 0, kind: input, shape index: {}]
  %s1 = inlined_call_operand.vmem [shape: f32[8,128], index: 1, kind: input, shape index: {}]
  %s2 = inlined_call_operand.vmem [shape: f32[1,128], index: 2, kind: input, shape index: {}]
  %s3 = inlined_call_operand.vmem [shape: f32[3,3,128], index: 3, kind: input, shape index: {}]
  %s4 = inlined_call_operand.vmem [shape: f32[1,128], index: 4, kind: input, shape index: {}]
  %s5 = inlined_call_operand.vmem [shape: f32[128,128], index: 5, kind: input, shape index: {}]
  %s6 = inlined_call_operand.vmem [shape: f32[1,128], index: 6, kind: input, shape index: {}]
  %s7 = inlined_call_operand.vmem [shape: f32[2,16,16,128], index: 7, kind: output, shape index: {}]
  %s8 = sld [smem:[#allocation0]]
  $region61: #{inverted_residual.1} parent=0
    _
  %s10 = ssub.s32 1, %s8
  %s11 = scalar_select 0, %s10, %s8
  loop: start=0, step=1, limit=10
  $region2: #{inverted_residual.1} parent=0 // loop_pre_header
    _
  $region3: #{inverted_residual.1} parent=0 // loop_header
    %s13 = sphi 0, %s17
    %p14 = scmp.ge.s32.totalorder %s13, 10
    %s20 = sphi 0, %s32
    %s21 = sphi 0, %s28
    %s22 = sphi 0, %s20
    %s23 = sphi 0, %s21
    %s24 = sphi 0, %s22
    %s25 = sphi 0, %s23
    %s35 = sphi 0, %s37
    %s38 = sphi 0, %s35
    %s39 = sphi 0, %s38
    %s55 = sphi 0, %s39
    %s59 = sphi 0, %s59
    %s61 = sphi 0, %s59
    %s62 = sphi 0, %s61
    %s76 = sphi 0, %s62
    %s80 = sphi 0, %s80
    %s82 = sphi 0, %s80
    %s83 = sphi 0, %s82
    %s97 = sphi 0, %s83
    %s101 = sphi 0, %s101
    %s103 = sphi 0, %s101
    %s104 = sphi 0, %s103
    %s118 = sphi 0, %s104
    %s122 = sphi 0, %s122
    %s124 = sphi 0, %s122
    %s125 = sphi 0, %s124
    %s139 = sphi 0, %s125
    %s143 = sphi 0, %s143
    %s145 = sphi 0, %s143
    %s146 = sphi 0, %s145
    %s160 = sphi 0, %s146
    %s164 = sphi 0, %s164
    %s166 = sphi 0, %s164
    %s167 = sphi 0, %s166
    %s181 = sphi 0, %s167
    %s189 = sphi 0, %s191
    %s192 = sphi 0, %s189
    %s193 = sphi 0, %s192
    %s209 = sphi 0, %s193
  $region4: #{inverted_residual.1} parent=0 // loop_header_branch
    %16 = sbr.rel (%p14) target = $region8
  $region5: #{inverted_residual.1} parent=0 // loop_body
    %s18 = ssub.s32 %s13, 1
    %s19 = ssub.s32 %s13, 2
    %s26 = sadd.s32 1, %s21
    %p27 = scmp.ge.s32.totalorder %s26, 4
    %s28 = scalar_select %p27, 0, %s26
    %s29 = sadd.s32 1, %s20
    %s30 = scalar_select %p27, %s29, %s20
    %p31 = scmp.ge.s32.totalorder %s30, 2
    %s32 = scalar_select %p31, 0, %s30
    %s33 = ssub.s32 %s20, %s32
    %p34 = scmp.eq.s32.totalorder %s33, 0
    %s36 = sadd.s32 %s35, 1
    %s37 = scalar_select %p34, %s35, %s36
    %p40 = pneg %p34
    %p41 = scmp.eq.s32.totalorder %s13, 7
    %p42 = por %p40, %p41
    %p43 = scmp.ne.s32.totalorder %s35, %s38
    %p44 = scmp.eq.s32.totalorder %s13, 0
    %p45 = por %p43, %p44
    %p46 = scmp.ne.s32.totalorder %s35, %s38
    %p47 = scmp.eq.s32.totalorder %s18, 7
    %p48 = por %p46, %p47
    %p49 = scmp.ne.s32.totalorder %s38, %s39
    %p50 = scmp.eq.s32.totalorder %s18, 0
    %p51 = por %p49, %p50
    %p52 = scmp.ne.s32.totalorder %s38, %s39
    %p53 = scmp.eq.s32.totalorder %s19, 7
    %p54 = por %p52, %p53
    %p56 = scmp.ne.s32.totalorder %s39, %s55
    %p57 = scmp.eq.s32.totalorder %s19, 0
    %p58 = por %p56, %p57
    %s60 = sadd.s32 %s59, 1
    %p63 = scmp.eq.s32.totalorder %s13, 7
    %p64 = scmp.ne.s32.totalorder %s59, %s61
    %p65 = scmp.eq.s32.totalorder %s13, 0
    %p66 = por %p64, %p65
    %p67 = scmp.ne.s32.totalorder %s59, %s61
    %p68 = scmp.eq.s32.totalorder %s18, 7
    %p69 = por %p67, %p68
    %p70 = scmp.ne.s32.totalorder %s61, %s62
    %p71 = scmp.eq.s32.totalorder %s18, 0
    %p72 = por %p70, %p71
    %p73 = scmp.ne.s32.totalorder %s61, %s62
    %p74 = scmp.eq.s32.totalorder %s19, 7
    %p75 = por %p73, %p74
    %p77 = scmp.ne.s32.totalorder %s62, %s76
    %p78 = scmp.eq.s32.totalorder %s19, 0
    %p79 = por %p77, %p78
    %s81 = sadd.s32 %s80, 1
    %p84 = scmp.eq.s32.totalorder %s13, 7
    %p85 = scmp.ne.s32.totalorder %s80, %s82
    %p86 = scmp.eq.s32.totalorder %s13, 0
    %p87 = por %p85, %p86
    %p88 = scmp.ne.s32.totalorder %s80, %s82
    %p89 = scmp.eq.s32.totalorder %s18, 7
    %p90 = por %p88, %p89
    %p91 = scmp.ne.s32.totalorder %s82, %s83
    %p92 = scmp.eq.s32.totalorder %s18, 0
    %p93 = por %p91, %p92
    %p94 = scmp.ne.s32.totalorder %s82, %s83
    %p95 = scmp.eq.s32.totalorder %s19, 7
    %p96 = por %p94, %p95
    %p98 = scmp.ne.s32.totalorder %s83, %s97
    %p99 = scmp.eq.s32.totalorder %s19, 0
    %p100 = por %p98, %p99
    %s102 = sadd.s32 %s101, 1
    %p105 = scmp.eq.s32.totalorder %s13, 7
    %p106 = scmp.ne.s32.totalorder %s101, %s103
    %p107 = scmp.eq.s32.totalorder %s13, 0
    %p108 = por %p106, %p107
    %p109 = scmp.ne.s32.totalorder %s101, %s103
    %p110 = scmp.eq.s32.totalorder %s18, 7
    %p111 = por %p109, %p110
    %p112 = scmp.ne.s32.totalorder %s103, %s104
    %p113 = scmp.eq.s32.totalorder %s18, 0
    %p114 = por %p112, %p113
    %p115 = scmp.ne.s32.totalorder %s103, %s104
    %p116 = scmp.eq.s32.totalorder %s19, 7
    %p117 = por %p115, %p116
    %p119 = scmp.ne.s32.totalorder %s104, %s118
    %p120 = scmp.eq.s32.totalorder %s19, 0
    %p121 = por %p119, %p120
    %s123 = sadd.s32 %s122, 1
    %p126 = scmp.eq.s32.totalorder %s13, 7
    %p127 = scmp.ne.s32.totalorder %s122, %s124
    %p128 = scmp.eq.s32.totalorder %s13, 0
    %p129 = por %p127, %p128
    %p130 = scmp.ne.s32.totalorder %s122, %s124
    %p131 = scmp.eq.s32.totalorder %s18, 7
    %p132 = por %p130, %p131
    %p133 = scmp.ne.s32.totalorder %s124, %s125
    %p134 = scmp.eq.s32.totalorder %s18, 0
    %p135 = por %p133, %p134
    %p136 = scmp.ne.s32.totalorder %s124, %s125
    %p137 = scmp.eq.s32.totalorder %s19, 7
    %p138 = por %p136, %p137
    %p140 = scmp.ne.s32.totalorder %s125, %s139
    %p141 = scmp.eq.s32.totalorder %s19, 0
    %p142 = por %p140, %p141
    %s144 = sadd.s32 %s143, 1
    %p147 = scmp.eq.s32.totalorder %s13, 7
    %p148 = scmp.ne.s32.totalorder %s143, %s145
    %p149 = scmp.eq.s32.totalorder %s13, 0
    %p150 = por %p148, %p149
    %p151 = scmp.ne.s32.totalorder %s143, %s145
    %p152 = scmp.eq.s32.totalorder %s18, 7
    %p153 = por %p151, %p152
    %p154 = scmp.ne.s32.totalorder %s145, %s146
    %p155 = scmp.eq.s32.totalorder %s18, 0
    %p156 = por %p154, %p155
    %p157 = scmp.ne.s32.totalorder %s145, %s146
    %p158 = scmp.eq.s32.totalorder %s19, 7
    %p159 = por %p157, %p158
    %p161 = scmp.ne.s32.totalorder %s146, %s160
    %p162 = scmp.eq.s32.totalorder %s19, 0
    %p163 = por %p161, %p162
    %s165 = sadd.s32 %s164, 1
    %p168 = scmp.eq.s32.totalorder %s13, 7
    %p169 = scmp.ne.s32.totalorder %s164, %s166
    %p170 = scmp.eq.s32.totalorder %s13, 0
    %p171 = por %p169, %p170
    %p172 = scmp.ne.s32.totalorder %s164, %s166
    %p173 = scmp.eq.s32.totalorder %s18, 7
    %p174 = por %p172, %p173
    %p175 = scmp.ne.s32.totalorder %s166, %s167
    %p176 = scmp.eq.s32.totalorder %s18, 0
    %p177 = por %p175, %p176
    %p178 = scmp.ne.s32.totalorder %s166, %s167
    %p179 = scmp.eq.s32.totalorder %s19, 7
    %p180 = por %p178, %p179
    %p182 = scmp.ne.s32.totalorder %s167, %s181
    %p183 = scmp.eq.s32.totalorder %s19, 0
    %p184 = por %p182, %p183
    %s185 = ssub.s32 %s20, %s32
    %s186 = ssub.s32 %s21, %s28
    %s187 = sor.u32 %s185, %s186
    %p188 = scmp.eq.s32.totalorder %s187, 0
    %s190 = sadd.s32 %s189, 1
    %s191 = scalar_select %p188, %s189, %s190
    %p194 = pneg %p188
    %p195 = scmp.eq.s32.totalorder %s13, 7
    %p196 = por %p194, %p195
    %p197 = scmp.ne.s32.totalorder %s189, %s192
    %p198 = scmp.eq.s32.totalorder %s13, 0
    %p199 = por %p197, %p198
    %p200 = scmp.ne.s32.totalorder %s189, %s192
    %p201 = scmp.eq.s32.totalorder %s18, 7
    %p202 = por %p200, %p201
    %p203 = scmp.ne.s32.totalorder %s192, %s193
    %p204 = scmp.eq.s32.totalorder %s18, 0
    %p205 = por %p203, %p204
    %p206 = scmp.ne.s32.totalorder %s192, %s193
    %p207 = scmp.eq.s32.totalorder %s19, 7
    %p208 = por %p206, %p207
    %p210 = scmp.ne.s32.totalorder %s193, %s209
    %p211 = scmp.eq.s32.totalorder %s19, 0
    %p212 = por %p210, %p211
    %p213 = scmp.le.s32.totalorder 1, %s13
    %p214 = scmp.lt.s32.totalorder %s13, 9
    %p215 = pnand %p213, %p214
    %p216 = pneg %p215
    // Predicated region
    $region9: #{inverted_residual.1} parent=5 // pred_check
      _
    $region10: #{inverted_residual.1} parent=5 // pred_check_branch
      %218 = sbr.rel (%p215) target = $region12
    $region11: #{inverted_residual.1} parent=5 // pred_region
      %s219 = ssub.s32 %s13, 1
      // Predicated region
      $region13: #{inverted_residual.1} parent=11 // pred_check
        %p220 = pneg %p72
      $region14: #{inverted_residual.1} parent=11 // pred_check_branch
        %222 = sbr.rel (%p220) target = $region16
      $region15: #{inverted_residual.1} parent=11 // pred_region
        _
      $region16: #{inverted_residual.1} parent=11 // pred_fallthru
        _
      // Predicated region
      $region17: #{inverted_residual.1} parent=11 // pred_check
        %p223 = pneg %p93
      $region18: #{inverted_residual.1} parent=11 // pred_check_branch
        %225 = sbr.rel (%p223) target = $region20
      $region19: #{inverted_residual.1} parent=11 // pred_region
        _
      $region20: #{inverted_residual.1} parent=11 // pred_fallthru
        _
      // Predicated region
      $region21: #{inverted_residual.1} parent=11 // pred_check
        %p226 = pneg %p114
      $region22: #{inverted_residual.1} parent=11 // pred_check_branch
        %228 = sbr.rel (%p226) target = $region24
      $region23: #{inverted_residual.1} parent=11 // pred_region
        _
      $region24: #{inverted_residual.1} parent=11 // pred_fallthru
        _
      // Predicated region
      $region25: #{inverted_residual.1} parent=11 // pred_check
        %p229 = pneg %p135
      $region26: #{inverted_residual.1} parent=11 // pred_check_branch
        %231 = sbr.rel (%p229) target = $region28
      $region27: #{inverted_residual.1} parent=11 // pred_region
        _
      $region28: #{inverted_residual.1} parent=11 // pred_fallthru
        _
      // Predicated region
      $region29: #{inverted_residual.1} parent=11 // pred_check
        %p232 = pneg %p156
      $region30: #{inverted_residual.1} parent=11 // pred_check_branch
        %234 = sbr.rel (%p232) target = $region32
      $region31: #{inverted_residual.1} parent=11 // pred_region
        _
      $region32: #{inverted_residual.1} parent=11 // pred_fallthru
        _
      // Predicated region
      $region33: #{inverted_residual.1} parent=11 // pred_check
        %p235 = pneg %p177
      $region34: #{inverted_residual.1} parent=11 // pred_check_branch
        %237 = sbr.rel (%p235) target = $region36
      $region35: #{inverted_residual.1} parent=11 // pred_region
        _
      $region36: #{inverted_residual.1} parent=11 // pred_fallthru
        _
    $region12: #{inverted_residual.1} parent=5 // pred_fallthru
      _
    %p238 = scmp.lt.s32.totalorder %s13, 8
    // Predicated region
    $region37: #{inverted_residual.1} parent=5 // pred_check
      %p239 = pneg %p238
    $region38: #{inverted_residual.1} parent=5 // pred_check_branch
      %241 = sbr.rel (%p239) target = $region40
    $region39: #{inverted_residual.1} parent=5 // pred_region
      // Predicated region
      $region41: #{inverted_residual.1} parent=39 // pred_check
        %p242 = pneg %p45
      $region42: #{inverted_residual.1} parent=39 // pred_check_branch
        %244 = sbr.rel (%p242) target = $region44
      $region43: #{inverted_residual.1} parent=39 // pred_region
        %p245 = scmp.lt.s32.totalorder %s20, 1
        %s246 = scalar_select %p245, %s20, 1
        %s247 = smul.addr %s246, 54
        %s248 = smul.addr %s247, 8
        %s249 = scalar_lea.vmem %s0, %s248
      $region44: #{inverted_residual.1} parent=39 // pred_fallthru
        _
    $region40: #{inverted_residual.1} parent=5 // pred_fallthru
      _
    %p250 = scmp.le.s32.totalorder 1, %s13
    %p251 = scmp.lt.s32.totalorder %s13, 9
    %p252 = pnand %p250, %p251
    %p253 = pneg %p252
    // Predicated region
    $region45: #{inverted_residual.1} parent=5 // pred_check
      _
    $region46: #{inverted_residual.1} parent=5 // pred_check_branch
      %255 = sbr.rel (%p252) target = $region48
    $region47: #{inverted_residual.1} parent=5 // pred_region
      %s256 = ssub.s32 %s13, 1
      %p257 = scmp.lt.s32.totalorder %s22, 1
      %s258 = scalar_select %p257, %s22, 1
      %s259 = smul.addr %s258, 54
      %s260 = smul.addr %s259, 8
      %s261 = scalar_lea.vmem %s0, %s260
      %p262 = pneg %p51
      %p263 = pneg %p48
      %p264 = pneg %p72
      %p265 = pneg %p69
      %p266 = pneg %p93
      %p267 = pneg %p90
      %p268 = pneg %p114
      %p269 = pneg %p111
      %p270 = pneg %p135
      %p271 = pneg %p132
      %p272 = pneg %p156
      %p273 = pneg %p153
      %p274 = pneg %p177
      %p275 = pneg %p174
      %p276 = pneg %p205
      %p277 = pneg %p202
      %s278 = smul.u32 4, %s23
      %p279 = scmp.lt.s32.totalorder %s22, 1
      %s280 = scalar_select %p279, %s22, 1
      %p281 = scmp.lt.s32.totalorder %s278, 15
      %s282 = scalar_select %p281, %s278, 15
      %s283 = smul.addr %s282, 2
      %s284 = smul.addr %s280, 32
      %s285 = sadd.s32 %s283, %s284
      %s286 = smul.addr %s285, 8
      %s287 = scalar_lea.vmem %s7, %s286
      %p288 = scmp.lt.s32.totalorder %s22, 1
      %s289 = scalar_select %p288, %s22, 1
      %s290 = smul.addr %s289, 54
      %s291 = smul.addr %s290, 8
      %s292 = scalar_lea.vmem %s0, %s291
      %s293 = smul.u32 4, %s23
      %p294 = scmp.lt.s32.totalorder %s22, 1
      %s295 = scalar_select %p294, %s22, 1
      %p296 = scmp.lt.s32.totalorder %s293, 15
      %s297 = scalar_select %p296, %s293, 15
      %s298 = smul.addr %s297, 2
      %s299 = smul.addr %s295, 32
      %s300 = sadd.s32 %s298, %s299
      %s301 = smul.addr %s300, 8
      %s302 = scalar_lea.vmem %s7, %s301
      %s303 = smul.u32 4, %s23
      %s304 = smul.u32 %s23, 4
      %s305 = smul.u32 %s304, 24
      %s306 = scalar_lea.vmem %s292, %s305
      %v307 = vld [vmem:[%s306] sm:$0xff]
      %v308 = vld [vmem:[%s306 + $0x8] sm:$0xff]
      %v309 = vld [vmem:[%s306 + $0x10] sm:$0x3]
      %v310 = vld [vmem:[%s306 + $0x18] sm:$0xff]
      %v311 = vld [vmem:[%s306 + $0x20] sm:$0xff]
      %v312 = vld [vmem:[%s306 + $0x28] sm:$0x3]
      %v313 = vld [vmem:[%s306 + $0x30] sm:$0xff]
      %v314 = vld [vmem:[%s306 + $0x38] sm:$0xff]
      %v315 = vld [vmem:[%s306 + $0x40] sm:$0x3]
      %v316 = vld [vmem:[%s306 + $0x48] sm:$0xff]
      %v317 = vld [vmem:[%s306 + $0x50] sm:$0xff]
      %v318 = vld [vmem:[%s306 + $0x58] sm:$0x3]
      %v319 = vld [vmem:[%s306 + $0x60] sm:$0xff]
      %v320 = vld [vmem:[%s306 + $0x68] sm:$0xff]
      %v321 = vld [vmem:[%s306 + $0x70] sm:$0x3]
      %v322 = vld [vmem:[%s306 + $0x78] sm:$0xff]
      %v323 = vld [vmem:[%s306 + $0x80] sm:$0xff]
      %v324 = vld [vmem:[%s306 + $0x88] sm:$0x3]
      %v343 = vrot.slane %v307, 2
      %v344 = vrot.slane %v307, 4
      %v345 = vrot.slane %v307, 6
      %v346 = vrot.slane %v308, 2
      %v347 = vrot.slane %v308, 4
      %v348 = vrot.slane %v308, 6
      %v349 = vrot.slane %v310, 2
      %v350 = vrot.slane %v310, 4
      %v351 = vrot.slane %v310, 6
      %v352 = vrot.slane %v311, 2
      %v353 = vrot.slane %v311, 4
      %v354 = vrot.slane %v311, 6
      %v355 = vrot.slane %v313, 2
      %v356 = vrot.slane %v313, 4
      %v357 = vrot.slane %v313, 6
      %v358 = vrot.slane %v314, 2
      %v359 = vrot.slane %v314, 4
      %v360 = vrot.slane %v314, 6
      %v361 = vrot.slane %v316, 2
      %v362 = vrot.slane %v316, 4
      %v363 = vrot.slane %v316, 6
      %v364 = vrot.slane %v317, 2
      %v365 = vrot.slane %v317, 4
      %v366 = vrot.slane %v317, 6
      %v367 = vrot.slane %v319, 2
      %v368 = vrot.slane %v319, 4
      %v369 = vrot.slane %v319, 6
      %v370 = vrot.slane %v320, 2
      %v371 = vrot.slane %v320, 4
      %v372 = vrot.slane %v320, 6
      %v373 = vrot.slane %v322, 2
      %v374 = vrot.slane %v322, 4
      %v375 = vrot.slane %v322, 6
      %v376 = vrot.slane %v323, 2
      %v377 = vrot.slane %v323, 4
      %v378 = vrot.slane %v323, 6
      %v379 = vld [vmem:[%s1] sm:$0xff]
      %v380 = vld [vmem:[%s2] sm:$0x1]
      %v382 = vperm.slane %v380, 0
      %384 = vst [vmem:[#allocation1] ss:$4 sm:$0xff] %v307
      %s385 = scalar_lea.vmem [#allocation1], 1
      %386 = vst [vmem:[%s385] ss:$4 sm:$0xff] %v343
      %s387 = scalar_lea.vmem [#allocation1], 2
      %388 = vst [vmem:[%s387] ss:$4 sm:$0xff] %v344
      %s389 = scalar_lea.vmem [#allocation1], 3
      %390 = vst [vmem:[%s389] ss:$4 sm:$0xff] %v345
      %s391 = scalar_lea.vmem [#allocation1], 32
      %392 = vst [vmem:[%s391] ss:$4 sm:$0xff] %v308
      %s393 = scalar_lea.vmem [#allocation1], 33
      %394 = vst [vmem:[%s393] ss:$4 sm:$0xff] %v346
      %s395 = scalar_lea.vmem [#allocation1], 34
      %396 = vst [vmem:[%s395] ss:$4 sm:$0xff] %v347
      %s397 = scalar_lea.vmem [#allocation1], 35
      %398 = vst [vmem:[%s397] ss:$4 sm:$0xff] %v348
      %v399 = vld.sshfl [vmem:[#allocation1] sm:$0xff pattern:$0x73625140]
      %v400 = vld.sshfl [vmem:[#allocation1 + $0x20] sm:$0xff pattern:$0x73625140]
      %401 = vst [vmem:[#allocation1] ss:$4 sm:$0xff] %v309
      %402 = vst [vmem:[%s385] ss:$4 sm:$0xff] %v310
      %403 = vst [vmem:[%s387] ss:$4 sm:$0xff] %v349
      %404 = vst [vmem:[%s389] ss:$4 sm:$0xff] %v350
      %405 = vst [vmem:[%s391] ss:$4 sm:$0xff] %v351
      %406 = vst [vmem:[%s393] ss:$4 sm:$0xff] %v311
      %407 = vst [vmem:[%s395] ss:$4 sm:$0xff] %v352
      %408 = vst [vmem:[%s397] ss:$4 sm:$0xff] %v353
      %v409 = vld.sshfl [vmem:[#allocation1] sm:$0xff pattern:$0x73625140]
      %v410 = vld.sshfl [vmem:[#allocation1 + $0x20] sm:$0xff pattern:$0x73625140]
      %411 = vst [vmem:[#allocation1] ss:$4 sm:$0xff] %v354
      %412 = vst [vmem:[%s385] ss:$4 sm:$0xff] %v312
      %413 = vst [vmem:[%s387] ss:$4 sm:$0xff] %v313
      %414 = vst [vmem:[%s389] ss:$4 sm:$0xff] %v355
      %415 = vst [vmem:[%s391] ss:$4 sm:$0xff] %v356
      %416 = vst [vmem:[%s393] ss:$4 sm:$0xff] %v357
      %417 = vst [vmem:[%s395] ss:$4 sm:$0xff] %v314
      %418 = vst [vmem:[%s397] ss:$4 sm:$0xff] %v358
      %v419 = vld.sshfl [vmem:[#allocation1] sm:$0xff pattern:$0x73625140]
      %v420 = vld.sshfl [vmem:[#allocation1 + $0x20] sm:$0xff pattern:$0x73625140]
      %421 = vst [vmem:[#allocation1] ss:$4 sm:$0xff] %v359
      %422 = vst [vmem:[%s385] ss:$4 sm:$0xff] %v360
      %423 = vst [vmem:[%s387] ss:$4 sm:$0xff] %v315
      %424 = vst [vmem:[%s389] ss:$4 sm:$0xff] %v316
      %425 = vst [vmem:[%s391] ss:$4 sm:$0xff] %v361
      %426 = vst [vmem:[%s393] ss:$4 sm:$0xff] %v362
      %427 = vst [vmem:[%s395] ss:$4 sm:$0xff] %v363
      %428 = vst [vmem:[%s397] ss:$4 sm:$0xff] %v317
      %v429 = vld.sshfl [vmem:[#allocation1] sm:$0xff pattern:$0x73625140]
      %v430 = vld.sshfl [vmem:[#allocation1 + $0x20] sm:$0xff pattern:$0x73625140]
      %431 = vst [vmem:[#allocation1] ss:$4 sm:$0xff] %v364
      %432 = vst [vmem:[%s385] ss:$4 sm:$0xff] %v365
      %433 = vst [vmem:[%s387] ss:$4 sm:$0xff] %v366
      %434 = vst [vmem:[%s389] ss:$4 sm:$0xff] %v318
      %435 = vst [vmem:[%s391] ss:$4 sm:$0xff] %v319
      %436 = vst [vmem:[%s393] ss:$4 sm:$0xff] %v367
      %437 = vst [vmem:[%s395] ss:$4 sm:$0xff] %v368
      %438 = vst [vmem:[%s397] ss:$4 sm:$0xff] %v369
      %v439 = vld.sshfl [vmem:[#allocation1] sm:$0xff pattern:$0x73625140]
      %v440 = vld.sshfl [vmem:[#allocation1 + $0x20] sm:$0xff pattern:$0x73625140]
      %441 = vst [vmem:[#allocation1] ss:$4 sm:$0xff] %v320
      %442 = vst [vmem:[%s385] ss:$4 sm:$0xff] %v370
      %443 = vst [vmem:[%s387] ss:$4 sm:$0xff] %v371
      %444 = vst [vmem:[%s389] ss:$4 sm:$0xff] %v372
      %445 = vst [vmem:[%s391] ss:$4 sm:$0xff] %v321
      %446 = vst [vmem:[%s393] ss:$4 sm:$0xff] %v322
      %447 = vst [vmem:[%s395] ss:$4 sm:$0xff] %v373
      %448 = vst [vmem:[%s397] ss:$4 sm:$0xff] %v374
      %v449 = vld.sshfl [vmem:[#allocation1] sm:$0xff pattern:$0x73625140]
      %v450 = vld.sshfl [vmem:[#allocation1 + $0x20] sm:$0xff pattern:$0x73625140]
      %451 = vst [vmem:[#allocation1] ss:$4 sm:$0xff] %v375
      %452 = vst [vmem:[%s385] ss:$4 sm:$0xff] %v323
      %453 = vst [vmem:[%s387] ss:$4 sm:$0xff] %v376
      %454 = vst [vmem:[%s389] ss:$4 sm:$0xff] %v377
      %455 = vst [vmem:[%s391] ss:$4 sm:$0xff] %v378
      %456 = vst [vmem:[%s393] ss:$4 sm:$0xff] %v324
      %v457 = vld.sshfl [vmem:[#allocation1] sm:$0xff pattern:$0x73625140]
      %v458 = vld.sshfl [vmem:[#allocation1 + $0x20] sm:$0xff pattern:$0x73625140]
      %vm459 = vcmask 64512
      %v460 = vsel %vm459, %v399, 0
      %v462 = vsel %vm459, %v400, 0
      %v464 = vsel %vm459, %v409, 0
      %v466 = vsel %vm459, %v410, 0
      %v468 = vsel %vm459, %v419, 0
      %v470 = vsel %vm459, %v420, 0
      %v472 = vsel %vm459, %v429, 0
      %v474 = vsel %vm459, %v430, 0
      %v476 = vsel %vm459, %v439, 0
      %v478 = vsel %vm459, %v440, 0
      %v480 = vsel %vm459, %v449, 0
      %v482 = vsel %vm459, %v450, 0
      %v484 = vsel %vm459, %v457, 0
      %v486 = vsel %vm459, %v458, 0
      %488 = vmatpush.msra.mxu0 0.0
      %489 = vmatpush.msra.mxu0 0.0
      %490 = vmatpush.msra.mxu0 0.0
      %491 = vmatpush.msra.mxu0 0.0
      %492 = vmatpush.msra.mxu0 0.0
      %493 = vmatpush.msra.mxu0 0.0
      %494 = vmatpush.msra.mxu0 0.0
      %495 = vmatpush.msra.mxu0 0.0
      %496 = vmatpush.msra.mxu0 0.0
      %497 = vmatpush.msra.mxu0 0.0
      %498 = vmatpush.msra.mxu0 0.0
      %499 = vmatpush.msra.mxu0 0.0
      %500 = vmatpush.msra.mxu0 0.0
      %501 = vmatpush.msra.mxu0 0.0
      %502 = vmatpush.msra.mxu0 0.0
      %503 = vmatpush.msra.mxu0 %v379
      %504 = vmatmul.f32.gmra.mxu0 %v460
      %v505 = vpop.f32.mrf.mxu0
      %v506 = vadd.f32 %v382, %v505
      %507 = vmatmul.f32.gmra.mxu0 %v462
      %v508 = vpop.f32.mrf.mxu0
      %v509 = vadd.f32 %v382, %v508
      %510 = vmatmul.f32.gmra.mxu0 %v464
      %v511 = vpop.f32.mrf.mxu0
      %v512 = vadd.f32 %v382, %v511
      %513 = vmatmul.f32.gmra.mxu0 %v466
      %v514 = vpop.f32.mrf.mxu0
      %v515 = vadd.f32 %v382, %v514
      %516 = vmatmul.f32.gmra.mxu0 %v468
      %v517 = vpop.f32.mrf.mxu0
      %v518 = vadd.f32 %v382, %v517
      %519 = vmatmul.f32.gmra.mxu0 %v470
      %v520 = vpop.f32.mrf.mxu0
      %v521 = vadd.f32 %v382, %v520
      %522 = vmatmul.f32.gmra.mxu0 %v472
      %v523 = vpop.f32.mrf.mxu0
      %v524 = vadd.f32 %v382, %v523
      %525 = vmatmul.f32.gmra.mxu0 %v474
      %v526 = vpop.f32.mrf.mxu0
      %v527 = vadd.f32 %v382, %v526
      %528 = vmatmul.f32.gmra.mxu0 %v476
      %v529 = vpop.f32.mrf.mxu0
      %v530 = vadd.f32 %v382, %v529
      %531 = vmatmul.f32.gmra.mxu0 %v478
      %v532 = vpop.f32.mrf.mxu0
      %v533 = vadd.f32 %v382, %v532
      %534 = vmatmul.f32.gmra.mxu0 %v480
      %v535 = vpop.f32.mrf.mxu0
      %v536 = vadd.f32 %v382, %v535
      %537 = vmatmul.f32.gmra.mxu0 %v482
      %v538 = vpop.f32.mrf.mxu0
      %v539 = vadd.f32 %v382, %v538
      %540 = vmatmul.f32.gmra.mxu0 %v484
      %v541 = vpop.f32.mrf.mxu0
      %v542 = vadd.f32 %v382, %v541
      %543 = vmatmul.f32.gmra.mxu0 %v486
      %v544 = vpop.f32.mrf.mxu0
      %v545 = vadd.f32 %v382, %v544
      %546 = vdwg.mxu0
      %v547 = vmax.f32 %v506, 0.0
      %v548 = vmax.f32 %v509, 0.0
      %v549 = vmax.f32 %v512, 0.0
      %v550 = vmax.f32 %v515, 0.0
      %v551 = vmax.f32 %v518, 0.0
      %v552 = vmax.f32 %v521, 0.0
      %v553 = vmax.f32 %v524, 0.0
      %v554 = vmax.f32 %v527, 0.0
      %v555 = vmax.f32 %v530, 0.0
      %v556 = vmax.f32 %v533, 0.0
      %v557 = vmax.f32 %v536, 0.0
      %v558 = vmax.f32 %v539, 0.0
      %v559 = vmax.f32 %v542, 0.0
      %v560 = vmax.f32 %v545, 0.0
      %v561 = vmin.f32 %v547, 6.0
      %v562 = vmin.f32 %v548, 6.0
      %v563 = vmin.f32 %v549, 6.0
      %v564 = vmin.f32 %v550, 6.0
      %v565 = vmin.f32 %v551, 6.0
      %v566 = vmin.f32 %v552, 6.0
      %v567 = vmin.f32 %v553, 6.0
      %v568 = vmin.f32 %v554, 6.0
      %v569 = vmin.f32 %v555, 6.0
      %v570 = vmin.f32 %v556, 6.0
      %v571 = vmin.f32 %v557, 6.0
      %v572 = vmin.f32 %v558, 6.0
      %v573 = vmin.f32 %v559, 6.0
      %v574 = vmin.f32 %v560, 6.0
      %v589 = vrot.slane %v561, 2
      %v590 = vrot.slane %v561, 4
      %v591 = vrot.slane %v561, 6
      %v592 = vrot.slane %v562, 2
      %v593 = vrot.slane %v562, 4
      %v594 = vrot.slane %v562, 6
      %v595 = vrot.slane %v563, 2
      %v596 = vrot.slane %v563, 4
      %v597 = vrot.slane %v563, 6
      %v598 = vrot.slane %v564, 2
      %v599 = vrot.slane %v564, 4
      %v600 = vrot.slane %v564, 6
      %v601 = vrot.slane %v565, 2
      %v602 = vrot.slane %v565, 4
      %v603 = vrot.slane %v565, 6
      %v604 = vrot.slane %v566, 2
      %v605 = vrot.slane %v566, 4
      %v606 = vrot.slane %v566, 6
      %v607 = vrot.slane %v567, 2
      %v608 = vrot.slane %v567, 4
      %v609 = vrot.slane %v567, 6
      %v610 = vrot.slane %v568, 2
      %v611 = vrot.slane %v568, 4
      %v612 = vrot.slane %v568, 6
      %v613 = vrot.slane %v569, 2
      %v614 = vrot.slane %v569, 4
      %v615 = vrot.slane %v569, 6
      %v616 = vrot.slane %v570, 2
      %v617 = vrot.slane %v570, 4
      %v618 = vrot.slane %v570, 6
      %v619 = vrot.slane %v571, 2
      %v620 = vrot.slane %v571, 4
      %v621 = vrot.slane %v571, 6
      %v622 = vrot.slane %v572, 2
      %v623 = vrot.slane %v572, 4
      %v624 = vrot.slane %v572, 6
      %v625 = vrot.slane %v573, 2
      %v626 = vrot.slane %v573, 4
      %v627 = vrot.slane %v573, 6
      %v628 = vrot.slane %v574, 2
      %v629 = vstv %s304
      %v630 = vadd.s32 %v629, 1
      %v631 = vadd.s32 %v629, 2
      %v632 = vadd.s32 %v629, 3
      %v633 = vadd.s32 %v629, 4
      %v634 = vadd.s32 %v629, 5
      %v635 = vlaneseq
      %v636 = vshrl.u32 %v635, 7
      %v637 = vadd.s32 %v636, 8
      %v638 = vadd.s32 %v636, 16
      %vm639 = vcmp.gt.s32.totalorder %v629, 0
      %vm640 = vcmp.gt.s32.totalorder %v630, 0
      %vm641 = vcmp.gt.s32.totalorder %v631, 0
      %vm642 = vcmp.gt.s32.totalorder %v632, 0
      %vm643 = vcmp.gt.s32.totalorder %v633, 0
      %vm644 = vcmp.gt.s32.totalorder %v634, 0
      %vm645 = vcmp.lt.s32.totalorder %v629, 17
      %vm646 = vcmp.lt.s32.totalorder %v630, 17
      %vm647 = vcmp.lt.s32.totalorder %v631, 17
      %vm648 = vcmp.lt.s32.totalorder %v632, 17
      %vm649 = vcmp.lt.s32.totalorder %v633, 17
      %vm650 = vcmp.lt.s32.totalorder %v634, 17
      %vm651 = vmand %vm639, %vm645
      %vm652 = vmand %vm640, %vm646
      %vm653 = vmand %vm641, %vm647
      %vm654 = vmand %vm642, %vm648
      %vm655 = vmand %vm643, %vm649
      %vm656 = vmand %vm644, %vm650
      %vm657 = vcmp.gt.s32.totalorder %v636, 0
      %vm658 = vcmp.gt.s32.totalorder %v637, 0
      %vm659 = vcmp.gt.s32.totalorder %v638, 0
      %vm660 = vmand %vm651, %vm657
      %vm661 = vmand %vm651, %vm658
      %vm662 = vmand %vm651, %vm659
      %vm663 = vmand %vm652, %vm657
      %vm664 = vmand %vm652, %vm658
      %vm665 = vmand %vm652, %vm659
      %vm666 = vmand %vm653, %vm657
      %vm667 = vmand %vm653, %vm658
      %vm668 = vmand %vm653, %vm659
      %vm669 = vmand %vm654, %vm657
      %vm670 = vmand %vm654, %vm658
      %vm671 = vmand %vm654, %vm659
      %vm672 = vmand %vm655, %vm657
      %vm673 = vmand %vm655, %vm658
      %vm674 = vmand %vm655, %vm659
      %vm675 = vmand %vm656, %vm657
      %vm676 = vmand %vm656, %vm658
      %vm677 = vmand %vm656, %vm659
      %vm678 = vcmp.lt.s32.totalorder %v636, 17
      %vm679 = vcmp.lt.s32.totalorder %v637, 17
      %vm680 = vcmp.lt.s32.totalorder %v638, 17
      %vm681 = vmand %vm660, %vm678
      %vm682 = vmand %vm661, %vm679
      %vm683 = vmand %vm662, %vm680
      %vm684 = vmand %vm663, %vm678
      %vm685 = vmand %vm664, %vm679
      %vm686 = vmand %vm665, %vm680
      %vm687 = vmand %vm666, %vm678
      %vm688 = vmand %vm667, %vm679
      %vm689 = vmand %vm668, %vm680
      %vm690 = vmand %vm669, %vm678
      %vm691 = vmand %vm670, %vm679
      %vm692 = vmand %vm671, %vm680
      %vm693 = vmand %vm672, %vm678
      %vm694 = vmand %vm673, %vm679
      %vm695 = vmand %vm674, %vm680
      %vm696 = vmand %vm675, %vm678
      %vm697 = vmand %vm676, %vm679
      %vm698 = vmand %vm677, %vm680
      %v699 = vsel %vm681, 1, 0
      %v700 = vsel %vm682, 1, 0
      %v701 = vsel %vm683, 1, 0
      %v702 = vsel %vm684, 1, 0
      %v703 = vsel %vm685, 1, 0
      %v704 = vsel %vm686, 1, 0
      %v705 = vsel %vm687, 1, 0
      %v706 = vsel %vm688, 1, 0
      %v707 = vsel %vm689, 1, 0
      %v708 = vsel %vm690, 1, 0
      %v709 = vsel %vm691, 1, 0
      %v710 = vsel %vm692, 1, 0
      %v711 = vsel %vm693, 1, 0
      %v712 = vsel %vm694, 1, 0
      %v713 = vsel %vm695, 1, 0
      %v714 = vsel %vm696, 1, 0
      %v715 = vsel %vm697, 1, 0
      %v716 = vsel %vm698, 1, 0
      %vm717 = vcmp.eq.s32.totalorder %v699, 1
      %vm718 = vcmp.eq.s32.totalorder %v700, 1
      %vm719 = vcmp.eq.s32.totalorder %v701, 1
      %vm720 = vcmp.eq.s32.totalorder %v702, 1
      %vm721 = vcmp.eq.s32.totalorder %v703, 1
      %vm722 = vcmp.eq.s32.totalorder %v704, 1
      %vm723 = vcmp.eq.s32.totalorder %v705, 1
      %vm724 = vcmp.eq.s32.totalorder %v706, 1
      %vm725 = vcmp.eq.s32.totalorder %v707, 1
      %vm726 = vcmp.eq.s32.totalorder %v708, 1
      %vm727 = vcmp.eq.s32.totalorder %v709, 1
      %vm728 = vcmp.eq.s32.totalorder %v710, 1
      %vm729 = vcmp.eq.s32.totalorder %v711, 1
      %vm730 = vcmp.eq.s32.totalorder %v712, 1
      %vm731 = vcmp.eq.s32.totalorder %v713, 1
      %vm732 = vcmp.eq.s32.totalorder %v714, 1
      %vm733 = vcmp.eq.s32.totalorder %v715, 1
      %vm734 = vcmp.eq.s32.totalorder %v716, 1
      %735 = vst [vmem:[#allocation1] ss:$4 sm:$0xff] %v561
      %s736 = scalar_lea.vmem [#allocation1], 1
      %737 = vst [vmem:[%s736] ss:$4 sm:$0xff] %v589
      %s738 = scalar_lea.vmem [#allocation1], 2
      %739 = vst [vmem:[%s738] ss:$4 sm:$0xff] %v590
      %s740 = scalar_lea.vmem [#allocation1], 3
      %741 = vst [vmem:[%s740] ss:$4 sm:$0xff] %v591
      %s742 = scalar_lea.vmem [#allocation1], 32
      %743 = vst [vmem:[%s742] ss:$4 sm:$0xff] %v562
      %s744 = scalar_lea.vmem [#allocation1], 33
      %745 = vst [vmem:[%s744] ss:$4 sm:$0xff] %v592
      %s746 = scalar_lea.vmem [#allocation1], 34
      %747 = vst [vmem:[%s746] ss:$4 sm:$0xff] %v593
      %s748 = scalar_lea.vmem [#allocation1], 35
      %749 = vst [vmem:[%s748] ss:$4 sm:$0xff] %v594
      %v750 = vld.sshfl [vmem:[#allocation1] sm:$0xff pattern:$0x73625140]
      %v751 = vld.sshfl [vmem:[#allocation1 + $0x20] sm:$0xff pattern:$0x73625140]
      %752 = vst [vmem:[#allocation1] ss:$4 sm:$0xff] %v563
      %v753 = vld.sshfl [vmem:[#allocation1] sm:$0xff pattern:$0x73625140]
      %754 = vst [vmem:[%s742] ss:$4 sm:$0xff] %v595
      %755 = vst [vmem:[%s744] ss:$4 sm:$0xff] %v596
      %756 = vst [vmem:[%s746] ss:$4 sm:$0xff] %v597
      %757 = vst [vmem:[%s748] ss:$4 sm:$0xff] %v564
      %v758 = vld.sshfl [vmem:[#allocation1 + $0x20] sm:$0xff pattern:$0x73625140]
      %759 = vst [vmem:[#allocation1] ss:$4 sm:$0xff] %v598
      %760 = vst [vmem:[%s736] ss:$4 sm:$0xff] %v599
      %761 = vst [vmem:[%s738] ss:$4 sm:$0xff] %v600
      %762 = vst [vmem:[%s740] ss:$4 sm:$0xff] %v565
      %763 = vst [vmem:[%s742] ss:$4 sm:$0xff] %v601
      %v764 = vld.sshfl [vmem:[#allocation1] sm:$0xff pattern:$0x73625140]
      %v765 = vld.sshfl [vmem:[#allocation1 + $0x20] sm:$0xff pattern:$0x73625140]
      %766 = vst [vmem:[#allocation1] ss:$4 sm:$0xff] %v602
      %767 = vst [vmem:[%s736] ss:$4 sm:$0xff] %v603
      %768 = vst [vmem:[%s738] ss:$4 sm:$0xff] %v566
      %769 = vst [vmem:[%s740] ss:$4 sm:$0xff] %v604
      %770 = vst [vmem:[%s742] ss:$4 sm:$0xff] %v605
      %771 = vst [vmem:[%s744] ss:$4 sm:$0xff] %v606
      %772 = vst [vmem:[%s746] ss:$4 sm:$0xff] %v567
      %773 = vst [vmem:[%s748] ss:$4 sm:$0xff] %v607
      %v774 = vld.sshfl [vmem:[#allocation1] sm:$0xff pattern:$0x73625140]
      %v775 = vld.sshfl [vmem:[#allocation1 + $0x20] sm:$0xff pattern:$0x73625140]
      %776 = vst [vmem:[#allocation1] ss:$4 sm:$0xff] %v608
      %v777 = vld.sshfl [vmem:[#allocation1] sm:$0xff pattern:$0x73625140]
      %778 = vst [vmem:[%s742] ss:$4 sm:$0xff] %v609
      %779 = vst [vmem:[%s744] ss:$4 sm:$0xff] %v568
      %780 = vst [vmem:[%s746] ss:$4 sm:$0xff] %v610
      %781 = vst [vmem:[%s748] ss:$4 sm:$0xff] %v611
      %v782 = vld.sshfl [vmem:[#allocation1 + $0x20] sm:$0xff pattern:$0x73625140]
      %783 = vst [vmem:[#allocation1] ss:$4 sm:$0xff] %v612
      %784 = vst [vmem:[%s736] ss:$4 sm:$0xff] %v569
      %785 = vst [vmem:[%s738] ss:$4 sm:$0xff] %v613
      %786 = vst [vmem:[%s740] ss:$4 sm:$0xff] %v614
      %787 = vst [vmem:[%s742] ss:$4 sm:$0xff] %v615
      %v788 = vld.sshfl [vmem:[#allocation1] sm:$0xff pattern:$0x73625140]
      %v789 = vld.sshfl [vmem:[#allocation1 + $0x20] sm:$0xff pattern:$0x73625140]
      %790 = vst [vmem:[#allocation1] ss:$4 sm:$0xff] %v570
      %791 = vst [vmem:[%s736] ss:$4 sm:$0xff] %v616
      %792 = vst [vmem:[%s738] ss:$4 sm:$0xff] %v617
      %793 = vst [vmem:[%s740] ss:$4 sm:$0xff] %v618
      %794 = vst [vmem:[%s742] ss:$4 sm:$0xff] %v571
      %795 = vst [vmem:[%s744] ss:$4 sm:$0xff] %v619
      %796 = vst [vmem:[%s746] ss:$4 sm:$0xff] %v620
      %797 = vst [vmem:[%s748] ss:$4 sm:$0xff] %v621
      %v798 = vld.sshfl [vmem:[#allocation1] sm:$0xff pattern:$0x73625140]
      %v799 = vld.sshfl [vmem:[#allocation1 + $0x20] sm:$0xff pattern:$0x73625140]
      %800 = vst [vmem:[#allocation1] ss:$4 sm:$0xff] %v572
      %v801 = vld.sshfl [vmem:[#allocation1] sm:$0xff pattern:$0x73625140]
      %802 = vst [vmem:[%s742] ss:$4 sm:$0xff] %v622
      %803 = vst [vmem:[%s744] ss:$4 sm:$0xff] %v623
      %804 = vst [vmem:[%s746] ss:$4 sm:$0xff] %v624
      %805 = vst [vmem:[%s748] ss:$4 sm:$0xff] %v573
      %v806 = vld.sshfl [vmem:[#allocation1 + $0x20] sm:$0xff pattern:$0x73625140]
      %807 = vst [vmem:[#allocation1] ss:$4 sm:$0xff] %v625
      %808 = vst [vmem:[%s736] ss:$4 sm:$0xff] %v626
      %809 = vst [vmem:[%s738] ss:$4 sm:$0xff] %v627
      %810 = vst [vmem:[%s740] ss:$4 sm:$0xff] %v574
      %811 = vst [vmem:[%s742] ss:$4 sm:$0xff] %v628
      %v812 = vld.sshfl [vmem:[#allocation1] sm:$0xff pattern:$0x73625140]
      %v813 = vld.sshfl [vmem:[#allocation1 + $0x20] sm:$0xff pattern:$0x73625140]
      %v832 = vsel %vm717, %v750, 0.0
      %v833 = vsel %vm718, %v751, 0.0
      %v834 = vsel %vm719, %v753, 0.0
      %v835 = vsel %vm720, %v758, 0.0
      %v836 = vsel %vm721, %v764, 0.0
      %v837 = vsel %vm722, %v765, 0.0
      %v838 = vsel %vm723, %v774, 0.0
      %v839 = vsel %vm724, %v775, 0.0
      %v840 = vsel %vm725, %v777, 0.0
      %v841 = vsel %vm726, %v782, 0.0
      %v842 = vsel %vm727, %v788, 0.0
      %v843 = vsel %vm728, %v789, 0.0
      %v844 = vsel %vm729, %v798, 0.0
      %v845 = vsel %vm730, %v799, 0.0
      %v846 = vsel %vm731, %v801, 0.0
      %v847 = vsel %vm732, %v806, 0.0
      %v848 = vsel %vm733, %v812, 0.0
      %v849 = vsel %vm734, %v813, 0.0
      %850 = vst [vmem:[#allocation2] sm:$0xff] %v832
      %851 = vst [vmem:[#allocation2 + $0x8] sm:$0xff] %v833
      %852 = vst [vmem:[#allocation2 + $0x10] sm:$0x3] %v834
      %853 = vst [vmem:[#allocation2 + $0x18] sm:$0xff] %v835
      %854 = vst [vmem:[#allocation2 + $0x20] sm:$0xff] %v836
      %855 = vst [vmem:[#allocation2 + $0x28] sm:$0x3] %v837
      %856 = vst [vmem:[#allocation2 + $0x30] sm:$0xff] %v838
      %857 = vst [vmem:[#allocation2 + $0x38] sm:$0xff] %v839
      %858 = vst [vmem:[#allocation2 + $0x40] sm:$0x3] %v840
      %859 = vst [vmem:[#allocation2 + $0x48] sm:$0xff] %v841
      %860 = vst [vmem:[#allocation2 + $0x50] sm:$0xff] %v842
      %861 = vst [vmem:[#allocation2 + $0x58] sm:$0x3] %v843
      %862 = vst [vmem:[#allocation2 + $0x60] sm:$0xff] %v844
      %863 = vst [vmem:[#allocation2 + $0x68] sm:$0xff] %v845
      %864 = vst [vmem:[#allocation2 + $0x70] sm:$0x3] %v846
      %865 = vst [vmem:[#allocation2 + $0x78] sm:$0xff] %v847
      %866 = vst [vmem:[#allocation2 + $0x80] sm:$0xff] %v848
      %867 = vst [vmem:[#allocation2 + $0x88] sm:$0x3] %v849
      %v868 = vld [vmem:[%s3] sm:$0x7]
      %v869 = vld [vmem:[%s3 + $0x4] sm:$0x7]
      %v870 = vld [vmem:[%s3 + $0x8] sm:$0x7]
      %v871 = vld [vmem:[#allocation2] sm:$0xff]
      %v872 = vld [vmem:[#allocation2 + $0x8] sm:$0xff]
      %v873 = vld [vmem:[#allocation2 + $0x18] sm:$0xff]
      %v874 = vld [vmem:[#allocation2 + $0x20] sm:$0xff]
      %v875 = vld [vmem:[#allocation2 + $0x30] sm:$0xff]
      %v876 = vld [vmem:[#allocation2 + $0x38] sm:$0xff]
      %v877 = vld [vmem:[#allocation2 + $0x48] sm:$0xff]
      %v878 = vld [vmem:[#allocation2 + $0x50] sm:$0xff]
      %v879 = vperm.slane %v868, 0
      %v880 = vmul.f32 %v871, %v879
      %v881 = vmul.f32 %v872, %v879
      %v882 = vmul.f32 %v873, %v879
      %v883 = vmul.f32 %v874, %v879
      %v884 = vmul.f32 %v875, %v879
      %v885 = vmul.f32 %v876, %v879
      %v886 = vmul.f32 %v877, %v879
      %v887 = vmul.f32 %v878, %v879
      %v888 = vld [vmem:[#allocation2 + $0x1] sm:$0xff]
      %v889 = vld [vmem:[#allocation2 + $0x9] sm:$0xff]
      %v890 = vld [vmem:[#allocation2 + $0x19] sm:$0xff]
      %v891 = vld [vmem:[#allocation2 + $0x21] sm:$0xff]
      %v892 = vld [vmem:[#allocation2 + $0x31] sm:$0xff]
      %v893 = vld [vmem:[#allocation2 + $0x39] sm:$0xff]
      %v894 = vld [vmem:[#allocation2 + $0x49] sm:$0xff]
      %v895 = vld [vmem:[#allocation2 + $0x51] sm:$0xff]
      %v896 = vperm.slane %v868, 1
      %v897 = vmul.f32 %v888, %v896
      %v898 = vmul.f32 %v889, %v896
      %v899 = vmul.f32 %v890, %v896
      %v900 = vmul.f32 %v891, %v896
      %v901 = vmul.f32 %v892, %v896
      %v902 = vmul.f32 %v893, %v896
      %v903 = vmul.f32 %v894, %v896
      %v904 = vmul.f32 %v895, %v896
      %v905 = vadd.f32 %v880, %v897
      %v906 = vadd.f32 %v881, %v898
      %v907 = vadd.f32 %v882, %v899
      %v908 = vadd.f32 %v883, %v900
      %v909 = vadd.f32 %v884, %v901
      %v910 = vadd.f32 %v885, %v902
      %v911 = vadd.f32 %v886, %v903
      %v912 = vadd.f32 %v887, %v904
      %v913 = vld [vmem:[#allocation2 + $0x2] sm:$0xff]
      %v914 = vld [vmem:[#allocation2 + $0xa] sm:$0xff]
      %v915 = vld [vmem:[#allocation2 + $0x1a] sm:$0xff]
      %v916 = vld [vmem:[#allocation2 + $0x22] sm:$0xff]
      %v917 = vld [vmem:[#allocation2 + $0x32] sm:$0xff]
      %v918 = vld [vmem:[#allocation2 + $0x3a] sm:$0xff]
      %v919 = vld [vmem:[#allocation2 + $0x4a] sm:$0xff]
      %v920 = vld [vmem:[#allocation2 + $0x52] sm:$0xff]
      %v921 = vperm.slane %v868, 2
      %v922 = vmul.f32 %v913, %v921
      %v923 = vmul.f32 %v914, %v921
      %v924 = vmul.f32 %v915, %v921
      %v925 = vmul.f32 %v916, %v921
      %v926 = vmul.f32 %v917, %v921
      %v927 = vmul.f32 %v918, %v921
      %v928 = vmul.f32 %v919, %v921
      %v929 = vmul.f32 %v920, %v921
      %v930 = vadd.f32 %v905, %v922
      %v931 = vadd.f32 %v906, %v923
      %v932 = vadd.f32 %v907, %v924
      %v933 = vadd.f32 %v908, %v925
      %v934 = vadd.f32 %v909, %v926
      %v935 = vadd.f32 %v910, %v927
      %v936 = vadd.f32 %v911, %v928
      %v937 = vadd.f32 %v912, %v929
      %s938 = scalar_lea.vmem [#allocation2], 24
      %v939 = vld [vmem:[%s938] sm:$0xff]
      %v940 = vld [vmem:[%s938 + $0x8] sm:$0xff]
      %v941 = vld [vmem:[%s938 + $0x18] sm:$0xff]
      %v942 = vld [vmem:[%s938 + $0x20] sm:$0xff]
      %v943 = vld [vmem:[%s938 + $0x30] sm:$0xff]
      %v944 = vld [vmem:[%s938 + $0x38] sm:$0xff]
      %v945 = vld [vmem:[%s938 + $0x48] sm:$0xff]
      %v946 = vld [vmem:[%s938 + $0x50] sm:$0xff]
      %v947 = vperm.slane %v869, 0
      %v948 = vmul.f32 %v939, %v947
      %v949 = vmul.f32 %v940, %v947
      %v950 = vmul.f32 %v941, %v947
      %v951 = vmul.f32 %v942, %v947
      %v952 = vmul.f32 %v943, %v947
      %v953 = vmul.f32 %v944, %v947
      %v954 = vmul.f32 %v945, %v947
      %v955 = vmul.f32 %v946, %v947
      %v956 = vadd.f32 %v930, %v948
      %v957 = vadd.f32 %v931, %v949
      %v958 = vadd.f32 %v932, %v950
      %v959 = vadd.f32 %v933, %v951
      %v960 = vadd.f32 %v934, %v952
      %v961 = vadd.f32 %v935, %v953
      %v962 = vadd.f32 %v936, %v954
      %v963 = vadd.f32 %v937, %v955
      %v964 = vld [vmem:[%s938 + $0x1] sm:$0xff]
      %v965 = vld [vmem:[%s938 + $0x9] sm:$0xff]
      %v966 = vld [vmem:[%s938 + $0x19] sm:$0xff]
      %v967 = vld [vmem:[%s938 + $0x21] sm:$0xff]
      %v968 = vld [vmem:[%s938 + $0x31] sm:$0xff]
      %v969 = vld [vmem:[%s938 + $0x39] sm:$0xff]
      %v970 = vld [vmem:[%s938 + $0x49] sm:$0xff]
      %v971 = vld [vmem:[%s938 + $0x51] sm:$0xff]
      %v972 = vperm.slane %v869, 1
      %v973 = vmul.f32 %v964, %v972
      %v974 = vmul.f32 %v965, %v972
      %v975 = vmul.f32 %v966, %v972
      %v976 = vmul.f32 %v967, %v972
      %v977 = vmul.f32 %v968, %v972
      %v978 = vmul.f32 %v969, %v972
      %v979 = vmul.f32 %v970, %v972
      %v980 = vmul.f32 %v971, %v972
      %v981 = vadd.f32 %v956, %v973
      %v982 = vadd.f32 %v957, %v974
      %v983 = vadd.f32 %v958, %v975
      %v984 = vadd.f32 %v959, %v976
      %v985 = vadd.f32 %v960, %v977
      %v986 = vadd.f32 %v961, %v978
      %v987 = vadd.f32 %v962, %v979
      %v988 = vadd.f32 %v963, %v980
      %v989 = vld [vmem:[%s938 + $0x2] sm:$0xff]
      %v990 = vld [vmem:[%s938 + $0xa] sm:$0xff]
      %v991 = vld [vmem:[%s938 + $0x1a] sm:$0xff]
      %v992 = vld [vmem:[%s938 + $0x22] sm:$0xff]
      %v993 = vld [vmem:[%s938 + $0x32] sm:$0xff]
      %v994 = vld [vmem:[%s938 + $0x3a] sm:$0xff]
      %v995 = vld [vmem:[%s938 + $0x4a] sm:$0xff]
      %v996 = vld [vmem:[%s938 + $0x52] sm:$0xff]
      %v997 = vperm.slane %v869, 2
      %v998 = vmul.f32 %v989, %v997
      %v999 = vmul.f32 %v990, %v997
      %v1000 = vmul.f32 %v991, %v997
      %v1001 = vmul.f32 %v992, %v997
      %v1002 = vmul.f32 %v993, %v997
      %v1003 = vmul.f32 %v994, %v997
      %v1004 = vmul.f32 %v995, %v997
      %v1005 = vmul.f32 %v996, %v997
      %v1006 = vadd.f32 %v981, %v998
      %v1007 = vadd.f32 %v982, %v999
      %v1008 = vadd.f32 %v983, %v1000
      %v1009 = vadd.f32 %v984, %v1001
      %v1010 = vadd.f32 %v985, %v1002
      %v1011 = vadd.f32 %v986, %v1003
      %v1012 = vadd.f32 %v987, %v1004
      %v1013 = vadd.f32 %v988, %v1005
      %s1014 = scalar_lea.vmem [#allocation2], 48
      %v1015 = vld [vmem:[%s1014] sm:$0xff]
      %v1016 = vld [vmem:[%s1014 + $0x8] sm:$0xff]
      %v1017 = vld [vmem:[%s1014 + $0x18] sm:$0xff]
      %v1018 = vld [vmem:[%s1014 + $0x20] sm:$0xff]
      %v1019 = vld [vmem:[%s1014 + $0x30] sm:$0xff]
      %v1020 = vld [vmem:[%s1014 + $0x38] sm:$0xff]
      %v1021 = vld [vmem:[%s1014 + $0x48] sm:$0xff]
      %v1022 = vld [vmem:[%s1014 + $0x50] sm:$0xff]
      %v1023 = vperm.slane %v870, 0
      %v1024 = vmul.f32 %v1015, %v1023
      %v1025 = vmul.f32 %v1016, %v1023
      %v1026 = vmul.f32 %v1017, %v1023
      %v1027 = vmul.f32 %v1018, %v1023
      %v1028 = vmul.f32 %v1019, %v1023
      %v1029 = vmul.f32 %v1020, %v1023
      %v1030 = vmul.f32 %v1021, %v1023
      %v1031 = vmul.f32 %v1022, %v1023
      %v1032 = vadd.f32 %v1006, %v1024
      %v1033 = vadd.f32 %v1007, %v1025
      %v1034 = vadd.f32 %v1008, %v1026
      %v1035 = vadd.f32 %v1009, %v1027
      %v1036 = vadd.f32 %v1010, %v1028
      %v1037 = vadd.f32 %v1011, %v1029
      %v1038 = vadd.f32 %v1012, %v1030
      %v1039 = vadd.f32 %v1013, %v1031
      %v1040 = vld [vmem:[%s1014 + $0x1] sm:$0xff]
      %v1041 = vld [vmem:[%s1014 + $0x9] sm:$0xff]
      %v1042 = vld [vmem:[%s1014 + $0x19] sm:$0xff]
      %v1043 = vld [vmem:[%s1014 + $0x21] sm:$0xff]
      %v1044 = vld [vmem:[%s1014 + $0x31] sm:$0xff]
      %v1045 = vld [vmem:[%s1014 + $0x39] sm:$0xff]
      %v1046 = vld [vmem:[%s1014 + $0x49] sm:$0xff]
      %v1047 = vld [vmem:[%s1014 + $0x51] sm:$0xff]
      %v1048 = vperm.slane %v870, 1
      %v1049 = vmul.f32 %v1040, %v1048
      %v1050 = vmul.f32 %v1041, %v1048
      %v1051 = vmul.f32 %v1042, %v1048
      %v1052 = vmul.f32 %v1043, %v1048
      %v1053 = vmul.f32 %v1044, %v1048
      %v1054 = vmul.f32 %v1045, %v1048
      %v1055 = vmul.f32 %v1046, %v1048
      %v1056 = vmul.f32 %v1047, %v1048
      %v1057 = vadd.f32 %v1032, %v1049
      %v1058 = vadd.f32 %v1033, %v1050
      %v1059 = vadd.f32 %v1034, %v1051
      %v1060 = vadd.f32 %v1035, %v1052
      %v1061 = vadd.f32 %v1036, %v1053
      %v1062 = vadd.f32 %v1037, %v1054
      %v1063 = vadd.f32 %v1038, %v1055
      %v1064 = vadd.f32 %v1039, %v1056
      %v1065 = vld [vmem:[%s1014 + $0x2] sm:$0xff]
      %v1066 = vld [vmem:[%s1014 + $0xa] sm:$0xff]
      %v1067 = vld [vmem:[%s1014 + $0x1a] sm:$0xff]
      %v1068 = vld [vmem:[%s1014 + $0x22] sm:$0xff]
      %v1069 = vld [vmem:[%s1014 + $0x32] sm:$0xff]
      %v1070 = vld [vmem:[%s1014 + $0x3a] sm:$0xff]
      %v1071 = vld [vmem:[%s1014 + $0x4a] sm:$0xff]
      %v1072 = vld [vmem:[%s1014 + $0x52] sm:$0xff]
      %v1073 = vperm.slane %v870, 2
      %v1074 = vmul.f32 %v1065, %v1073
      %v1075 = vmul.f32 %v1066, %v1073
      %v1076 = vmul.f32 %v1067, %v1073
      %v1077 = vmul.f32 %v1068, %v1073
      %v1078 = vmul.f32 %v1069, %v1073
      %v1079 = vmul.f32 %v1070, %v1073
      %v1080 = vmul.f32 %v1071, %v1073
      %v1081 = vmul.f32 %v1072, %v1073
      %v1082 = vadd.f32 %v1057, %v1074
      %v1083 = vadd.f32 %v1058, %v1075
      %v1084 = vadd.f32 %v1059, %v1076
      %v1085 = vadd.f32 %v1060, %v1077
      %v1086 = vadd.f32 %v1061, %v1078
      %v1087 = vadd.f32 %v1062, %v1079
      %v1088 = vadd.f32 %v1063, %v1080
      %v1089 = vadd.f32 %v1064, %v1081
      %v1090 = vld [vmem:[%s4] sm:$0x1]
      %v1092 = vperm.slane %v1090, 0
      %v1094 = vadd.f32 %v1082, %v1092
      %v1095 = vadd.f32 %v1083, %v1092
      %v1096 = vadd.f32 %v1084, %v1092
      %v1097 = vadd.f32 %v1085, %v1092
      %v1098 = vadd.f32 %v1086, %v1092
      %v1099 = vadd.f32 %v1087, %v1092
      %v1100 = vadd.f32 %v1088, %v1092
      %v1101 = vadd.f32 %v1089, %v1092
      %v1102 = vmax.f32 %v1094, 0.0
      %v1103 = vmax.f32 %v1095, 0.0
      %v1104 = vmax.f32 %v1096, 0.0
      %v1105 = vmax.f32 %v1097, 0.0
      %v1106 = vmax.f32 %v1098, 0.0
      %v1107 = vmax.f32 %v1099, 0.0
      %v1108 = vmax.f32 %v1100, 0.0
      %v1109 = vmax.f32 %v1101, 0.0
      %v1110 = vmin.f32 %v1102, 6.0
      %v1111 = vmin.f32 %v1103, 6.0
      %v1112 = vmin.f32 %v1104, 6.0
      %v1113 = vmin.f32 %v1105, 6.0
      %v1114 = vmin.f32 %v1106, 6.0
      %v1115 = vmin.f32 %v1107, 6.0
      %v1116 = vmin.f32 %v1108, 6.0
      %v1117 = vmin.f32 %v1109, 6.0
      %v1118 = vld [vmem:[%s5] sm:$0xff]
      %v1119 = vld [vmem:[%s5 + $0x8] sm:$0xff]
      %v1120 = vld [vmem:[%s5 + $0x10] sm:$0xff]
      %v1121 = vld [vmem:[%s5 + $0x18] sm:$0xff]
      %v1122 = vld [vmem:[%s5 + $0x20] sm:$0xff]
      %v1123 = vld [vmem:[%s5 + $0x28] sm:$0xff]
      %v1124 = vld [vmem:[%s5 + $0x30] sm:$0xff]
      %v1125 = vld [vmem:[%s5 + $0x38] sm:$0xff]
      %v1126 = vld [vmem:[%s5 + $0x40] sm:$0xff]
      %v1127 = vld [vmem:[%s5 + $0x48] sm:$0xff]
      %v1128 = vld [vmem:[%s5 + $0x50] sm:$0xff]
      %v1129 = vld [vmem:[%s5 + $0x58] sm:$0xff]
      %v1130 = vld [vmem:[%s5 + $0x60] sm:$0xff]
      %v1131 = vld [vmem:[%s5 + $0x68] sm:$0xff]
      %v1132 = vld [vmem:[%s5 + $0x70] sm:$0xff]
      %v1133 = vld [vmem:[%s5 + $0x78] sm:$0xff]
      %v1134 = vld [vmem:[%s6] sm:$0x1]
      %v1136 = vperm.slane %v1134, 0
      %1138 = vmatpush.msra.mxu0 %v1133
      %1139 = vmatpush.msra.mxu0 %v1132
      %1140 = vmatpush.msra.mxu0 %v1131
      %1141 = vmatpush.msra.mxu0 %v1130
      %1142 = vmatpush.msra.mxu0 %v1129
      %1143 = vmatpush.msra.mxu0 %v1128
      %1144 = vmatpush.msra.mxu0 %v1127
      %1145 = vmatpush.msra.mxu0 %v1126
      %1146 = vmatpush.msra.mxu0 %v1125
      %1147 = vmatpush.msra.mxu0 %v1124
      %1148 = vmatpush.msra.mxu0 %v1123
      %1149 = vmatpush.msra.mxu0 %v1122
      %1150 = vmatpush.msra.mxu0 %v1121
      %1151 = vmatpush.msra.mxu0 %v1120
      %1152 = vmatpush.msra.mxu0 %v1119
      %1153 = vmatpush.msra.mxu0 %v1118
      %1154 = vmatmul.f32.gmra.mxu0 %v1110
      %v1155 = vpop.f32.mrf.mxu0
      %v1156 = vadd.f32 %v1136, %v1155
      %1157 = vmatmul.f32.gmra.mxu0 %v1111
      %v1158 = vpop.f32.mrf.mxu0
      %v1159 = vadd.f32 %v1136, %v1158
      %1160 = vmatmul.f32.gmra.mxu0 %v1112
      %v1161 = vpop.f32.mrf.mxu0
      %v1162 = vadd.f32 %v1136, %v1161
      %1163 = vmatmul.f32.gmra.mxu0 %v1113
      %v1164 = vpop.f32.mrf.mxu0
      %v1165 = vadd.f32 %v1136, %v1164
      %1166 = vmatmul.f32.gmra.mxu0 %v1114
      %v1167 = vpop.f32.mrf.mxu0
      %v1168 = vadd.f32 %v1136, %v1167
      %1169 = vmatmul.f32.gmra.mxu0 %v1115
      %v1170 = vpop.f32.mrf.mxu0
      %v1171 = vadd.f32 %v1136, %v1170
      %1172 = vmatmul.f32.gmra.mxu0 %v1116
      %v1173 = vpop.f32.mrf.mxu0
      %v1174 = vadd.f32 %v1136, %v1173
      %1175 = vmatmul.f32.gmra.mxu0 %v1117
      %v1176 = vpop.f32.mrf.mxu0
      %v1177 = vadd.f32 %v1136, %v1176
      %1178 = vdwg.mxu0
      %s1179 = sadd.s32 %s304, 1
      %s1180 = smul.u32 %s1179, 24
      %s1181 = scalar_lea.vmem %s292, %s1180
      %v1182 = vld [vmem:[%s1181] sm:$0xff]
      %v1183 = vld [vmem:[%s1181 + $0x8] sm:$0xff]
      %v1184 = vld [vmem:[%s1181 + $0x10] sm:$0x3]
      %v1185 = vld [vmem:[%s1181 + $0x18] sm:$0xff]
      %v1186 = vld [vmem:[%s1181 + $0x20] sm:$0xff]
      %v1187 = vld [vmem:[%s1181 + $0x28] sm:$0x3]
      %v1188 = vld [vmem:[%s1181 + $0x30] sm:$0xff]
      %v1189 = vld [vmem:[%s1181 + $0x38] sm:$0xff]
      %v1190 = vld [vmem:[%s1181 + $0x40] sm:$0x3]
      %v1191 = vld [vmem:[%s1181 + $0x48] sm:$0xff]
      %v1192 = vld [vmem:[%s1181 + $0x50] sm:$0xff]
      %v1193 = vld [vmem:[%s1181 + $0x58] sm:$0x3]
      %vm1206 = vcmask 1046528
      %v1207 = vrot.slane %v1182, 1
      %v1208 = vrot.slane %v1183, 1
      %v1209 = vsel %vm1206, %v1207, %v1208
      %v1210 = vrot.slane %v1184, 1
      %v1211 = vsel %vm1206, %v1208, %v1210
      %v1212 = vrot.slane %v1185, 1
      %v1213 = vrot.slane %v1186, 1
      %v1214 = vsel %vm1206, %v1212, %v1213
      %v1215 = vrot.slane %v1187, 1
      %v1216 = vsel %vm1206, %v1213, %v1215
      %v1217 = vrot.slane %v1188, 1
      %v1218 = vrot.slane %v1189, 1
      %v1219 = vsel %vm1206, %v1217, %v1218
      %v1220 = vrot.slane %v1190, 1
      %v1221 = vsel %vm1206, %v1218, %v1220
      %v1222 = vrot.slane %v1191, 1
      %v1223 = vrot.slane %v1192, 1
      %v1224 = vsel %vm1206, %v1222, %v1223
      %v1225 = vrot.slane %v1193, 1
      %v1226 = vsel %vm1206, %v1223, %v1225
      %v1235 = vsel %vm459, %v1209, 0.0
      %v1236 = vsel %vm459, %v1211, 0.0
      %v1237 = vsel %vm459, %v1214, 0.0
      %v1238 = vsel %vm459, %v1216, 0.0
      %v1239 = vsel %vm459, %v1219, 0.0
      %v1240 = vsel %vm459, %v1221, 0.0
      %v1241 = vsel %vm459, %v1224, 0.0
      %v1242 = vsel %vm459, %v1226, 0.0
      %v1243 = vadd.f32 %v1156, %v1235
      %v1244 = vadd.f32 %v1159, %v1236
      %v1245 = vadd.f32 %v1162, %v1237
      %v1246 = vadd.f32 %v1165, %v1238
      %v1247 = vadd.f32 %v1168, %v1239
      %v1248 = vadd.f32 %v1171, %v1240
      %v1249 = vadd.f32 %v1174, %v1241
      %v1250 = vadd.f32 %v1177, %v1242
      %1251 = vst [vmem:[%s302] sm:$0xff] %v1243
      %1252 = vst [vmem:[%s302 + $0x8] sm:$0xff] %v1244
      %1253 = vst [vmem:[%s302 + $0x10] sm:$0xff] %v1245
      %1254 = vst [vmem:[%s302 + $0x18] sm:$0xff] %v1246
      %1255 = vst [vmem:[%s302 + $0x20] sm:$0xff] %v1247
      %1256 = vst [vmem:[%s302 + $0x28] sm:$0xff] %v1248
      %1257 = vst [vmem:[%s302 + $0x30] sm:$0xff] %v1249
      %1258 = vst [vmem:[%s302 + $0x38] sm:$0xff] %v1250
      %s1259 = smul.u32 4, %s23
      %p1260 = scmp.lt.s32.totalorder %s22, 1
      %s1261 = scalar_select %p1260, %s22, 1
      %p1262 = scmp.lt.s32.totalorder %s1259, 15
      %s1263 = scalar_select %p1262, %s1259, 15
      %s1264 = smul.addr %s1263, 2
      %s1265 = smul.addr %s1261, 32
      %s1266 = sadd.s32 %s1264, %s1265
      %s1267 = smul.addr %s1266, 8
      %s1268 = scalar_lea.vmem %s7, %s1267
      // Predicated region
      $region49: #{inverted_residual.1} parent=47 // pred_check
        %p1269 = pneg %p202
      $region50: #{inverted_residual.1} parent=47 // pred_check_branch
        %1271 = sbr.rel (%p1269) target = $region52
      $region51: #{inverted_residual.1} parent=47 // pred_region
        %s1272 = smul.u32 4, %s23
      $region52: #{inverted_residual.1} parent=47 // pred_fallthru
        _
    $region48: #{inverted_residual.1} parent=5 // pred_fallthru
      _
    %p1273 = scmp.le.s32.totalorder 2, %s13
    // Predicated region
    $region53: #{inverted_residual.1} parent=5 // pred_check
      %p1274 = pneg %p1273
    $region54: #{inverted_residual.1} parent=5 // pred_check_branch
      %1276 = sbr.rel (%p1274) target = $region56
    $region55: #{inverted_residual.1} parent=5 // pred_region
      %s1277 = ssub.s32 %s13, 2
      // Predicated region
      $region57: #{inverted_residual.1} parent=55 // pred_check
        %p1278 = pneg %p208
      $region58: #{inverted_residual.1} parent=55 // pred_check_branch
        %1280 = sbr.rel (%p1278) target = $region60
      $region59: #{inverted_residual.1} parent=55 // pred_region
        %s1281 = smul.u32 4, %s25
        %p1282 = scmp.lt.s32.totalorder %s24, 1
        %s1283 = scalar_select %p1282, %s24, 1
        %p1284 = scmp.lt.s32.totalorder %s1281, 15
        %s1285 = scalar_select %p1284, %s1281, 15
        %s1286 = smul.addr %s1285, 2
        %s1287 = smul.addr %s1283, 32
        %s1288 = sadd.s32 %s1286, %s1287
        %s1289 = smul.addr %s1288, 8
        %s1290 = scalar_lea.vmem %s7, %s1289
      $region60: #{inverted_residual.1} parent=55 // pred_fallthru
        _
    $region56: #{inverted_residual.1} parent=5 // pred_fallthru
      _
  $region6: #{inverted_residual.1} parent=0 // loop_footer
    %s17 = sadd.s32 1, %s13
  $region7: #{inverted_residual.1} parent=0 // loop_footer_branch
    %12 = sbr.rel target = $region3
  $region8: #{inverted_residual.1} parent=0 // loop_exit
    _

</llo_original>
